<compile_context>
chip_gen: v7x
topology: tpu7x:2x2x1
jax: 0.10.0
libtpu: 0.0.40
codegen_flags: <defaults>
</compile_context>

<pallas_src>
import math
from functools import partial

import jax
import jax.numpy as jnp
import numpy as np
from jax.experimental import pallas as pl
from jax.experimental.pallas import tpu as pltpu

_HIGH = jax.lax.Precision.HIGHEST
_NEG = -1e30  # finite large-negative mask value (avoids exp(-inf - -inf) = NaN)


def _round_up(v, m):
    return -(-v // m) * m


def _gpts_attn_kernel(x_ref, bmask_ref, kbias_ref, qmaskT_ref,
                      wqkv_ref, bqkv_ref, wfcT_ref, bfcT_ref,
                      outT_ref, *, num_heads, attn_dim, all_dim):
    x = x_ref[...]                                            # (M, D) bf16

    # ---- fused Q|K|V projection (1/sqrt(input_dim) pre-folded into the Q columns) ----
    qkv = jnp.dot(x, wqkv_ref[...],
                  preferred_element_type=jnp.float32) + bqkv_ref[...]   # (M, 3*all_dim) f32
    qkv_b = qkv.astype(jnp.bfloat16)                          # single cast, sliced per head

    # additive bias: precomputed block-diagonal mask (resident) + per-step key existence
    bias = bmask_ref[...] + kbias_ref[0]                      # (M, M)

    wfcT = wfcT_ref[...]                                      # (attn_dim, all_dim) bf16

    acc = None
    for h in range(num_heads):                                # static unroll; lane slices
        lo = h * attn_dim
        qh = qkv_b[:, lo:lo + attn_dim]
        kh = qkv_b[:, all_dim + lo:all_dim + lo + attn_dim]
        vh = qkv_b[:, 2 * all_dim + lo:2 * all_dim + lo + attn_dim]

        # dense (M, M) scores; cross-sequence / non-existent keys masked by `bias`
        s = jax.lax.dot_general(qh, kh, (((1,), (1,)), ((), ())),
                                preferred_element_type=jnp.float32)      # q @ k^T
        s = s + bias
        p = jnp.exp(s - jnp.max(s, axis=-1, keepdims=True))              # unnormalized, <= 1
        l = jnp.sum(p, axis=-1, keepdims=True)                           # (M, 1)
        # dropout(p): identity (eval / inference mode)
        o = jnp.dot(p.astype(jnp.bfloat16), vh,
                    preferred_element_type=jnp.float32)                  # (M, attn_dim)
        o = o * pl.reciprocal(l, approx=True)                            # normalize after PV

        # per-head fc accumulation, transposed -> lane-dense (attn_dim, M) store
        oT = jax.lax.dot_general(wfcT[:, lo:lo + attn_dim], o.astype(jnp.bfloat16),
                                 (((1,), (1,)), ((), ())),
                                 preferred_element_type=jnp.float32)     # (attn_dim, M)
        acc = oT if acc is None else acc + oT

    # query-existence mask commutes with fc (per-row scale) -> apply on the tiny slab
    outT_ref[...] = (acc * qmaskT_ref[0] + bfcT_ref[...]).astype(outT_ref.dtype)


@partial(jax.jit, static_argnames=("num_heads", "attn_dim", "embed_time"))
def gpts_forward(params, times_in, data_in, mask_in, t_exist,
                 *, num_heads, attn_dim, embed_time):
    B, N = times_in.shape
    V = data_in.shape[-1]
    input_dim = 2 * V + embed_time
    all_dim = num_heads * attn_dim
    f32 = jnp.float32

    # ---- pad the sequence dim to a multiple of 8 (padded keys are masked out) ----
    Npad = _round_up(N, 8)
    if Npad != N:
        times_in = jnp.pad(times_in, ((0, 0), (0, Npad - N)))
        t_exist = jnp.pad(t_exist, ((0, 0), (0, Npad - N)))
        data_in = jnp.pad(data_in, ((0, 0), (0, Npad - N), (0, 0)))
        mask_in = jnp.pad(mask_in, ((0, 0), (0, Npad - N), (0, 0)))

    # ---- TimeEmbedding (sin) + feature concat: trivial XLA fusion, emitted as bf16 ----
    tt = times_in[..., None].astype(f32)
    temb = jnp.concatenate([tt * params["wl"] + params["bl"],
                            jnp.sin(tt * params["wp"] + params["bp"])], axis=-1)
    x = jnp.concatenate([data_in.astype(f32), mask_in.astype(f32), temb],
                        axis=-1).astype(jnp.bfloat16)                    # (B, Npad, D)

    # ---- grid layout: Bb sequences flattened per step, rows padded to M % 128 == 0 ----
    Bb = max(1, min(B, pl.cdiv(128, Npad)))   # sequences per grid step (target ~128 rows)
    Bpad = pl.cdiv(B, Bb) * Bb
    G = Bpad // Bb
    R = Bb * Npad                             # real rows per grid step
    M = _round_up(R, 128)                     # lane-dense output / MXU-friendly row count

    if Bpad != B:
        x = jnp.pad(x, ((0, Bpad - B), (0, 0), (0, 0)))
        t_exist = jnp.pad(t_exist, ((0, Bpad - B), (0, 0)), constant_values=1.0)

    x_blk = x.reshape(G, R, input_dim)
    te_blk = t_exist.astype(f32).reshape(G, R)
    if M != R:
        x_blk = jnp.pad(x_blk, ((0, 0), (0, M - R), (0, 0)))
        te_blk = jnp.pad(te_blk, ((0, 0), (0, M - R)), constant_values=1.0)
    x_flat = x_blk.reshape(G * M, input_dim)

    kbias = jnp.where(te_blk == 0.0, _NEG, 0.0).reshape(G, 1, M)   # additive key bias/step
    qmaskT = te_blk.reshape(G, 1, M)                               # multiplicative query mask

    # static block-diagonal mask: built with numpy (zero XLA ops), resident across steps
    row = np.arange(M)
    seq_id = np.where(row < R, row // Npad, -1)
    bmask = jnp.asarray(
        np.where(seq_id[:, None] == seq_id[None, :], 0.0, _NEG).astype(np.float32))

    # fused / pre-scaled / pre-transposed weights (bf16 MXU operands, f32 biases)
    inv_scale = 1.0 / math.sqrt(float(input_dim))
    wqkv = jnp.concatenate([params["wq"] * inv_scale, params["wk"], params["wv"]],
                           axis=-1).astype(jnp.bfloat16)               # (D, 3*all_dim)
    bqkv = jnp.concatenate([params["bq"] * inv_scale, params["bk"], params["bv"]],
                           axis=-1).astype(f32)                        # (1, 3*all_dim)
    wfcT = params["wfc"].T.astype(jnp.bfloat16)                        # (attn_dim, all_dim)
    bfcT = params["bfc"].T.astype(f32)                                 # (attn_dim, 1)

    kern = partial(_gpts_attn_kernel, num_heads=num_heads, attn_dim=attn_dim,
                   all_dim=all_dim)

    in_specs = [
        pl.BlockSpec((M, input_dim), lambda i: (i, 0)),               # activations
        pl.BlockSpec((M, M), lambda i: (0, 0)),                       # block-diag mask (resident)
        pl.BlockSpec((1, 1, M), lambda i: (i, 0, 0)),                 # key-existence bias
        pl.BlockSpec((1, 1, M), lambda i: (i, 0, 0)),                 # query mask (row)
        pl.BlockSpec((input_dim, 3 * all_dim), lambda i: (0, 0)),     # Wq'|Wk|Wv fused
        pl.BlockSpec((1, 3 * all_dim), lambda i: (0, 0)),             # bq'|bk|bv fused
        pl.BlockSpec((attn_dim, all_dim), lambda i: (0, 0)),          # Wfc^T
        pl.BlockSpec((attn_dim, 1), lambda i: (0, 0)),                # bfc^T
    ]
    out_spec = pl.BlockSpec((attn_dim, M), lambda i: (0, i))          # lane-dense slab

    outT = pl.pallas_call(
        kern,
        out_shape=jax.ShapeDtypeStruct((attn_dim, G * M), f32),
        grid_spec=pltpu.PrefetchScalarGridSpec(
            num_scalar_prefetch=0, grid=(G,),
            in_specs=in_specs, out_specs=out_spec),
        compiler_params=pltpu.CompilerParams(
            dimension_semantics=("parallel",)),
    )(x_flat, bmask, kbias, qmaskT, wqkv, bqkv, wfcT, bfcT)

    # layout plumbing back to (B, N, attn_dim); fuses with the rest under jit
    out = outT.reshape(attn_dim, G, M)[:, :, :R].reshape(attn_dim, Bpad, Npad)
    return jnp.transpose(out, (1, 2, 0))[:B, :N]


def gpts_reference(params, times_in, data_in, mask_in, t_exist,
                   *, num_heads, attn_dim, embed_time):
    """Pure-JAX f32/HIGHEST reference mirroring the PyTorch forward."""
    B, N = times_in.shape
    input_dim = 2 * data_in.shape[-1] + embed_time
    tt = times_in[..., None].astype(jnp.float32)
    out1 = tt * params["wl"] + params["bl"]
    out2 = jnp.sin(tt * params["wp"] + params["bp"])
    x = jnp.concatenate([data_in, mask_in, jnp.concatenate([out1, out2], -1)], -1)

    def proj(w, b):
        y = jnp.einsum("bnd,df->bnf", x, w, precision=_HIGH) + b
        return y.reshape(B, N, num_heads, attn_dim).transpose(0, 2, 1, 3)

    q = proj(params["wq"], params["bq"])
    k = proj(params["wk"], params["bk"])
    v = proj(params["wv"], params["bv"])
    scores = jnp.einsum("bhqa,bhka->bhqk", q, k, precision=_HIGH) / math.sqrt(input_dim)
    scores = jnp.where(t_exist[:, None, None, :] == 0.0, -jnp.inf, scores)
    attn = jax.nn.softmax(scores, axis=-1)
    out = jnp.einsum("bhqk,bhka->bhqa", attn, v, precision=_HIGH)
    out = jnp.where(t_exist[:, None, :, None] == 0.0, 0.0, out)
    out = out.transpose(0, 2, 1, 3).reshape(B, N, num_heads * attn_dim)
    return jnp.einsum("bnf,fo->bno", out, params["wfc"], precision=_HIGH) + params["bfc"]


def init_params(key, variable_num, embed_time, attn_dim, num_heads):
    input_dim = 2 * variable_num + embed_time
    all_dim = attn_dim * num_heads
    ks = jax.random.split(key, 12)

    def lin(kw, kb, fan_in, fan_out):
        scale = 1.0 / math.sqrt(fan_in)
        w = jax.random.uniform(kw, (fan_in, fan_out), jnp.float32, -scale, scale)
        b = jax.random.uniform(kb, (1, fan_out), jnp.float32, -scale, scale)
        return w, b

    wl, bl = lin(ks[0], ks[1], 1, 1)
    wp, bp = lin(ks[2], ks[3], 1, embed_time - 1)
    wq, bq = lin(ks[4], ks[5], input_dim, all_dim)
    wk, bk = lin(ks[6], ks[7], input_dim, all_dim)
    wv, bv = lin(ks[8], ks[9], input_dim, all_dim)
    wfc, bfc = lin(ks[10], ks[11], all_dim, attn_dim)
    return dict(wl=wl, bl=bl, wp=wp, bp=bp, wq=wq, bq=bq, wk=wk, bk=bk,
                wv=wv, bv=bv, wfc=wfc, bfc=bfc)


if __name__ == "__main__":
    # args: variable_num=4, embed_time=8, attn_dim=16, nhead=2, dropout (eval -> identity)
    # B=32, N=8 -> Bb=16 sequences per step, M=128 rows, G=2 parallel grid steps.
    B, N = 32, 8
    variable_num, embed_time, attn_dim, nhead = 4, 8, 16, 2

    key = jax.random.PRNGKey(0)
    kp, kt, kd, km = jax.random.split(key, 4)

    params = init_params(kp, variable_num, embed_time, attn_dim, nhead)

    times_in = jax.random.uniform(kt, (B, N), jnp.float32)
    mask_in = (jax.random.uniform(km, (B, N, variable_num)) > 0.3).astype(jnp.float32)
    data_in = jax.random.normal(kd, (B, N, variable_num), jnp.float32) * mask_in
    # t_exist: last two timesteps of each sequence are absent.
    t_exist = jnp.ones((B, N), jnp.float32).at[:, -2:].set(0.0)

    latent = gpts_forward(params, times_in, data_in, mask_in, t_exist,
                          num_heads=nhead, attn_dim=attn_dim, embed_time=embed_time)
    latent = jax.block_until_ready(latent)

    ref = gpts_reference(params, times_in, data_in, mask_in, t_exist,
                         num_heads=nhead, attn_dim=attn_dim, embed_time=embed_time)
    # bf16 MXU operands with f32 accumulation + approx reciprocal -> compare loosely.
    np.testing.assert_allclose(np.asarray(latent), np.asarray(ref), rtol=5e-2, atol=5e-2)
    print("KERNEL_OK")
</pallas_src>

<mosaic_0001>
module attributes {stable_mosaic.version = 11 : i64} {
  func.func @_gpts_attn_kernel(%arg0: i32, %arg1: memref<128x16xbf16, #tpu.memory_space<vmem>>, %arg2: memref<128x128xf32, #tpu.memory_space<vmem>>, %arg3: memref<1x1x128xf32, #tpu.memory_space<vmem>>, %arg4: memref<1x1x128xf32, #tpu.memory_space<vmem>>, %arg5: memref<16x96xbf16, #tpu.memory_space<vmem>>, %arg6: memref<1x96xf32, #tpu.memory_space<vmem>>, %arg7: memref<16x32xbf16, #tpu.memory_space<vmem>>, %arg8: memref<16x1xf32, #tpu.memory_space<vmem>>, %arg9: memref<16x128xf32, #tpu.memory_space<vmem>>) attributes {dimension_semantics = [#tpu.dimension_semantics<parallel>], iteration_bounds = array<i64: 2>, scalar_prefetch = 0 : i64, scratch_operands = 0 : i64, tpu.core_type = #tpu.core_type<tc>, window_params = [{transform_indices = @transform_0, window_bounds = array<i64: 128, 16>}, {pipeline_mode = #tpu.pipeline_mode<synchronous>, transform_indices = @transform_1, window_bounds = array<i64: 128, 128>}, {transform_indices = @transform_2, window_bounds = array<i64: 1, 1, 128>}, {transform_indices = @transform_3, window_bounds = array<i64: 1, 1, 128>}, {pipeline_mode = #tpu.pipeline_mode<synchronous>, transform_indices = @transform_4, window_bounds = array<i64: 16, 96>}, {pipeline_mode = #tpu.pipeline_mode<synchronous>, transform_indices = @transform_5, window_bounds = array<i64: 1, 96>}, {pipeline_mode = #tpu.pipeline_mode<synchronous>, transform_indices = @transform_6, window_bounds = array<i64: 16, 32>}, {pipeline_mode = #tpu.pipeline_mode<synchronous>, transform_indices = @transform_7, window_bounds = array<i64: 16, 1>}, {transform_indices = @transform_8, window_bounds = array<i64: 16, 128>}]} {
    %c0 = arith.constant 0 : index
    %c0_0 = arith.constant 0 : index
    %0 = vector.load %arg1[%c0, %c0_0] : memref<128x16xbf16, #tpu.memory_space<vmem>>, vector<128x16xbf16>
    %c0_1 = arith.constant 0 : index
    %c0_2 = arith.constant 0 : index
    %1 = vector.load %arg5[%c0_1, %c0_2] : memref<16x96xbf16, #tpu.memory_space<vmem>>, vector<16x96xbf16>
    %cst = arith.constant dense<0.000000e+00> : vector<128x96xf32>
    %2 = tpu.matmul %0, %1, %cst {dimension_numbers = #tpu.dot_dimension_numbers<[1], [0], [0], [1], [0, 0, 1, 1], [], []>} : vector<128x16xbf16>, vector<16x96xbf16>, vector<128x96xf32> -> vector<128x96xf32>
    %c0_3 = arith.constant 0 : index
    %c0_4 = arith.constant 0 : index
    %3 = vector.load %arg6[%c0_3, %c0_4] : memref<1x96xf32, #tpu.memory_space<vmem>>, vector<1x96xf32>
    %4 = vector.broadcast %3 : vector<1x96xf32> to vector<128x96xf32>
    %5 = arith.addf %2, %4 : vector<128x96xf32>
    %6 = arith.truncf %5 : vector<128x96xf32> to vector<128x96xbf16>
    %c0_5 = arith.constant 0 : index
    %c0_6 = arith.constant 0 : index
    %7 = vector.load %arg2[%c0_5, %c0_6] : memref<128x128xf32, #tpu.memory_space<vmem>>, vector<128x128xf32>
    %c0_7 = arith.constant 0 : index
    %c0_8 = arith.constant 0 : index
    %c0_9 = arith.constant 0 : index
    %8 = vector.load %arg3[%c0_7, %c0_8, %c0_9] : memref<1x1x128xf32, #tpu.memory_space<vmem>>, vector<1x1x128xf32>
    %9 = vector.shape_cast %8 : vector<1x1x128xf32> to vector<1x128xf32>
    %10 = vector.broadcast %9 : vector<1x128xf32> to vector<128x128xf32>
    %11 = arith.addf %7, %10 : vector<128x128xf32>
    %c0_10 = arith.constant 0 : index
    %c0_11 = arith.constant 0 : index
    %12 = vector.load %arg7[%c0_10, %c0_11] : memref<16x32xbf16, #tpu.memory_space<vmem>>, vector<16x32xbf16>
    %13 = vector.extract_strided_slice %6 {offsets = [0, 0], sizes = [128, 16], strides = [1, 1]} : vector<128x96xbf16> to vector<128x16xbf16>
    %14 = vector.extract_strided_slice %6 {offsets = [0, 32], sizes = [128, 16], strides = [1, 1]} : vector<128x96xbf16> to vector<128x16xbf16>
    %15 = vector.extract_strided_slice %6 {offsets = [0, 64], sizes = [128, 16], strides = [1, 1]} : vector<128x96xbf16> to vector<128x16xbf16>
    %cst_12 = arith.constant dense<0.000000e+00> : vector<128x128xf32>
    %16 = tpu.matmul %13, %14, %cst_12 {dimension_numbers = #tpu.dot_dimension_numbers<[1], [1], [0], [0], [0, 0, 1, 0], [], []>} : vector<128x16xbf16>, vector<128x16xbf16>, vector<128x128xf32> -> vector<128x128xf32>
    %17 = arith.addf %16, %11 : vector<128x128xf32>
    %cst_13 = arith.constant dense<0xFF800000> : vector<128xf32>
    %18 = vector.multi_reduction <maximumf>, %17, %cst_13 [1] : vector<128x128xf32> to vector<128xf32>
    %19 = vector.shape_cast %18 : vector<128xf32> to vector<128x1xf32>
    %20 = vector.broadcast %19 : vector<128x1xf32> to vector<128x128xf32>
    %21 = arith.subf %17, %20 : vector<128x128xf32>
    %22 = math.exp %21 : vector<128x128xf32>
    %cst_14 = arith.constant dense<0.000000e+00> : vector<128xf32>
    %23 = vector.multi_reduction <add>, %22, %cst_14 [1] : vector<128x128xf32> to vector<128xf32>
    %24 = vector.shape_cast %23 : vector<128xf32> to vector<128x1xf32>
    %25 = arith.truncf %22 : vector<128x128xf32> to vector<128x128xbf16>
    %cst_15 = arith.constant dense<0.000000e+00> : vector<128x16xf32>
    %26 = tpu.matmul %25, %15, %cst_15 {dimension_numbers = #tpu.dot_dimension_numbers<[1], [0], [0], [1], [0, 0, 1, 1], [], []>} : vector<128x128xbf16>, vector<128x16xbf16>, vector<128x16xf32> -> vector<128x16xf32>
    %27 = tpu.reciprocal %24 {approx = true} : vector<128x1xf32> -> vector<128x1xf32>
    %28 = vector.broadcast %27 : vector<128x1xf32> to vector<128x16xf32>
    %29 = arith.mulf %26, %28 : vector<128x16xf32>
    %30 = vector.extract_strided_slice %12 {offsets = [0, 0], sizes = [16, 16], strides = [1, 1]} : vector<16x32xbf16> to vector<16x16xbf16>
    %31 = arith.truncf %29 : vector<128x16xf32> to vector<128x16xbf16>
    %cst_16 = arith.constant dense<0.000000e+00> : vector<16x128xf32>
    %32 = tpu.matmul %30, %31, %cst_16 {dimension_numbers = #tpu.dot_dimension_numbers<[1], [1], [0], [0], [0, 0, 1, 0], [], []>} : vector<16x16xbf16>, vector<128x16xbf16>, vector<16x128xf32> -> vector<16x128xf32>
    %33 = vector.extract_strided_slice %6 {offsets = [0, 16], sizes = [128, 16], strides = [1, 1]} : vector<128x96xbf16> to vector<128x16xbf16>
    %34 = vector.extract_strided_slice %6 {offsets = [0, 48], sizes = [128, 16], strides = [1, 1]} : vector<128x96xbf16> to vector<128x16xbf16>
    %35 = vector.extract_strided_slice %6 {offsets = [0, 80], sizes = [128, 16], strides = [1, 1]} : vector<128x96xbf16> to vector<128x16xbf16>
    %cst_17 = arith.constant dense<0.000000e+00> : vector<128x128xf32>
    %36 = tpu.matmul %33, %34, %cst_17 {dimension_numbers = #tpu.dot_dimension_numbers<[1], [1], [0], [0], [0, 0, 1, 0], [], []>} : vector<128x16xbf16>, vector<128x16xbf16>, vector<128x128xf32> -> vector<128x128xf32>
    %37 = arith.addf %36, %11 : vector<128x128xf32>
    %cst_18 = arith.constant dense<0xFF800000> : vector<128xf32>
    %38 = vector.multi_reduction <maximumf>, %37, %cst_18 [1] : vector<128x128xf32> to vector<128xf32>
    %39 = vector.shape_cast %38 : vector<128xf32> to vector<128x1xf32>
    %40 = vector.broadcast %39 : vector<128x1xf32> to vector<128x128xf32>
    %41 = arith.subf %37, %40 : vector<128x128xf32>
    %42 = math.exp %41 : vector<128x128xf32>
    %cst_19 = arith.constant dense<0.000000e+00> : vector<128xf32>
    %43 = vector.multi_reduction <add>, %42, %cst_19 [1] : vector<128x128xf32> to vector<128xf32>
    %44 = vector.shape_cast %43 : vector<128xf32> to vector<128x1xf32>
    %45 = arith.truncf %42 : vector<128x128xf32> to vector<128x128xbf16>
    %cst_20 = arith.constant dense<0.000000e+00> : vector<128x16xf32>
    %46 = tpu.matmul %45, %35, %cst_20 {dimension_numbers = #tpu.dot_dimension_numbers<[1], [0], [0], [1], [0, 0, 1, 1], [], []>} : vector<128x128xbf16>, vector<128x16xbf16>, vector<128x16xf32> -> vector<128x16xf32>
    %47 = tpu.reciprocal %44 {approx = true} : vector<128x1xf32> -> vector<128x1xf32>
    %48 = vector.broadcast %47 : vector<128x1xf32> to vector<128x16xf32>
    %49 = arith.mulf %46, %48 : vector<128x16xf32>
    %50 = vector.extract_strided_slice %12 {offsets = [0, 16], sizes = [16, 16], strides = [1, 1]} : vector<16x32xbf16> to vector<16x16xbf16>
    %51 = arith.truncf %49 : vector<128x16xf32> to vector<128x16xbf16>
    %cst_21 = arith.constant dense<0.000000e+00> : vector<16x128xf32>
    %52 = tpu.matmul %50, %51, %cst_21 {dimension_numbers = #tpu.dot_dimension_numbers<[1], [1], [0], [0], [0, 0, 1, 0], [], []>} : vector<16x16xbf16>, vector<128x16xbf16>, vector<16x128xf32> -> vector<16x128xf32>
    %53 = arith.addf %32, %52 : vector<16x128xf32>
    %c0_22 = arith.constant 0 : index
    %c0_23 = arith.constant 0 : index
    %c0_24 = arith.constant 0 : index
    %54 = vector.load %arg4[%c0_22, %c0_23, %c0_24] : memref<1x1x128xf32, #tpu.memory_space<vmem>>, vector<1x1x128xf32>
    %55 = vector.shape_cast %54 : vector<1x1x128xf32> to vector<1x128xf32>
    %56 = vector.broadcast %55 : vector<1x128xf32> to vector<16x128xf32>
    %57 = arith.mulf %53, %56 : vector<16x128xf32>
    %c0_25 = arith.constant 0 : index
    %c0_26 = arith.constant 0 : index
    %58 = vector.load %arg8[%c0_25, %c0_26] : memref<16x1xf32, #tpu.memory_space<vmem>>, vector<16x1xf32>
    %59 = vector.broadcast %58 : vector<16x1xf32> to vector<16x128xf32>
    %60 = arith.addf %57, %59 : vector<16x128xf32>
    %c0_27 = arith.constant 0 : index
    %c0_28 = arith.constant 0 : index
    %61 = vector.load %arg9[%c0_27, %c0_28] : memref<16x128xf32, #tpu.memory_space<vmem>>, vector<16x128xf32>
    tpu.vector_store %arg9[%c0_27, %c0_28], %60 {strides = array<i32>} : memref<16x128xf32, #tpu.memory_space<vmem>>, vector<16x128xf32>,
    return
  }
  func.func @transform_0(%arg0: i32) -> (i32, i32) {
    %c0_i32 = arith.constant 0 : i32
    %c0_i32_0 = arith.constant 0 : i32
    return %arg0, %c0_i32 : i32, i32
  }
  func.func @transform_1(%arg0: i32) -> (i32, i32) {
    %c0_i32 = arith.constant 0 : i32
    %c0_i32_0 = arith.constant 0 : i32
    %c0_i32_1 = arith.constant 0 : i32
    return %c0_i32, %c0_i32_0 : i32, i32
  }
  func.func @transform_2(%arg0: i32) -> (i32, i32, i32) {
    %c0_i32 = arith.constant 0 : i32
    %c0_i32_0 = arith.constant 0 : i32
    %c0_i32_1 = arith.constant 0 : i32
    return %arg0, %c0_i32, %c0_i32_0 : i32, i32, i32
  }
  func.func @transform_3(%arg0: i32) -> (i32, i32, i32) {
    %c0_i32 = arith.constant 0 : i32
    %c0_i32_0 = arith.constant 0 : i32
    %c0_i32_1 = arith.constant 0 : i32
    return %arg0, %c0_i32, %c0_i32_0 : i32, i32, i32
  }
  func.func @transform_4(%arg0: i32) -> (i32, i32) {
    %c0_i32 = arith.constant 0 : i32
    %c0_i32_0 = arith.constant 0 : i32
    %c0_i32_1 = arith.constant 0 : i32
    return %c0_i32, %c0_i32_0 : i32, i32
  }
  func.func @transform_5(%arg0: i32) -> (i32, i32) {
    %c0_i32 = arith.constant 0 : i32
    %c0_i32_0 = arith.constant 0 : i32
    %c0_i32_1 = arith.constant 0 : i32
    return %c0_i32, %c0_i32_0 : i32, i32
  }
  func.func @transform_6(%arg0: i32) -> (i32, i32) {
    %c0_i32 = arith.constant 0 : i32
    %c0_i32_0 = arith.constant 0 : i32
    %c0_i32_1 = arith.constant 0 : i32
    return %c0_i32, %c0_i32_0 : i32, i32
  }
  func.func @transform_7(%arg0: i32) -> (i32, i32) {
    %c0_i32 = arith.constant 0 : i32
    %c0_i32_0 = arith.constant 0 : i32
    %c0_i32_1 = arith.constant 0 : i32
    return %c0_i32, %c0_i32_0 : i32, i32
  }
  func.func @transform_8(%arg0: i32) -> (i32, i32) {
    %c0_i32 = arith.constant 0 : i32
    %c0_i32_0 = arith.constant 0 : i32
    return %c0_i32, %arg0 : i32, i32
  }
}

</mosaic_0001>

<llo_original>
// kernel: gpts_forward.1
$region0: #{gpts_forward.1}
  #allocation0 [shape = 'u32[]', space=smem, size = 0x4, offset = 0x4, fixed_abs, tag = 'smem constant byte address 0x4 - core index']
  #allocation1 [shape = 'u32[144,128]{1,0:T(1,128)}', space=vmem, size = 0x12000, scoped, tag = 'internal scratch']
  %s0 = inlined_call_operand.vmem [shape: bf16[256,16], index: 0, kind: input, shape index: {}]
  %s1 = inlined_call_operand.vmem [shape: f32[128,128], index: 1, kind: input, shape index: {}]
  %s2 = inlined_call_operand.vmem [shape: f32[2,1,128], index: 2, kind: input, shape index: {}]
  %s3 = inlined_call_operand.vmem [shape: f32[2,1,128], index: 3, kind: input, shape index: {}]
  %s4 = inlined_call_operand.vmem [shape: bf16[16,96], index: 4, kind: input, shape index: {}]
  %s5 = inlined_call_operand.vmem [shape: f32[1,96], index: 5, kind: input, shape index: {}]
  %s6 = inlined_call_operand.vmem [shape: bf16[16,32], index: 6, kind: input, shape index: {}]
  %s7 = inlined_call_operand.vmem [shape: f32[16,1], index: 7, kind: input, shape index: {}]
  %s8 = inlined_call_operand.vmem [shape: f32[16,256], index: 8, kind: output, shape index: {}]
  %s9 = sld [smem:[#allocation0]]
  $region99: #{gpts_forward.1} parent=0
    _
  %s11 = ssub.s32 1, %s9
  %s12 = scalar_select 0, %s11, %s9
  $region1: #{gpts_forward.1} parent=0
    #allocation2 [shape = 'u8[16384]{0}', space=vmem, size = 0x4000, scoped, tag = 'output window, operand 0']
    loop: start=0, step=1, limit=4
    $region2: #{gpts_forward.1} parent=1 // loop_pre_header
      _
    $region3: #{gpts_forward.1} parent=1 // loop_header
      %s14 = sphi 0, %s18
      %p15 = scmp.ge.s32.totalorder %s14, 4
      %s24 = sphi 0, %s26
      %s27 = sphi 0, %s24
      %s28 = sphi 0, %s27
      %s44 = sphi 0, %s28
      %s48 = sphi 0, %s48
      %s50 = sphi 0, %s48
      %s51 = sphi 0, %s50
      %s65 = sphi 0, %s51
      %s71 = sphi 0, %s73
      %s74 = sphi 0, %s71
      %s75 = sphi 0, %s74
      %s91 = sphi 0, %s75
      %s97 = sphi 0, %s99
      %s100 = sphi 0, %s97
      %s101 = sphi 0, %s100
      %s117 = sphi 0, %s101
      %s121 = sphi 0, %s121
      %s123 = sphi 0, %s121
      %s124 = sphi 0, %s123
      %s138 = sphi 0, %s124
      %s142 = sphi 0, %s142
      %s144 = sphi 0, %s142
      %s145 = sphi 0, %s144
      %s159 = sphi 0, %s145
      %s163 = sphi 0, %s163
      %s165 = sphi 0, %s163
      %s166 = sphi 0, %s165
      %s180 = sphi 0, %s166
      %s184 = sphi 0, %s184
      %s186 = sphi 0, %s184
      %s187 = sphi 0, %s186
      %s201 = sphi 0, %s187
      %s207 = sphi 0, %s209
      %s210 = sphi 0, %s207
      %s211 = sphi 0, %s210
      %s227 = sphi 0, %s211
    $region4: #{gpts_forward.1} parent=1 // loop_header_branch
      %17 = sbr.rel (%p15) target = $region8
    $region5: #{gpts_forward.1} parent=1 // loop_body
      %s19 = ssub.s32 %s14, 1
      %s20 = ssub.s32 %s14, 2
      %s21 = sadd.s32 %s14, 1
      %s22 = ssub.s32 %s14, %s21
      %p23 = scmp.eq.s32.totalorder %s22, 0
      %s25 = sadd.s32 %s24, 1
      %s26 = scalar_select %p23, %s24, %s25
      %p29 = pneg %p23
      %p30 = scmp.eq.s32.totalorder %s14, 1
      %p31 = por %p29, %p30
      %p32 = scmp.ne.s32.totalorder %s24, %s27
      %p33 = scmp.eq.s32.totalorder %s14, 0
      %p34 = por %p32, %p33
      %p35 = scmp.ne.s32.totalorder %s24, %s27
      %p36 = scmp.eq.s32.totalorder %s19, 1
      %p37 = por %p35, %p36
      %p38 = scmp.ne.s32.totalorder %s27, %s28
      %p39 = scmp.eq.s32.totalorder %s19, 0
      %p40 = por %p38, %p39
      %p41 = scmp.ne.s32.totalorder %s27, %s28
      %p42 = scmp.eq.s32.totalorder %s20, 1
      %p43 = por %p41, %p42
      %p45 = scmp.ne.s32.totalorder %s28, %s44
      %p46 = scmp.eq.s32.totalorder %s20, 0
      %p47 = por %p45, %p46
      %s49 = sadd.s32 %s48, 1
      %p52 = scmp.eq.s32.totalorder %s14, 1
      %p53 = scmp.ne.s32.totalorder %s48, %s50
      %p54 = scmp.eq.s32.totalorder %s14, 0
      %p55 = por %p53, %p54
      %p56 = scmp.ne.s32.totalorder %s48, %s50
      %p57 = scmp.eq.s32.totalorder %s19, 1
      %p58 = por %p56, %p57
      %p59 = scmp.ne.s32.totalorder %s50, %s51
      %p60 = scmp.eq.s32.totalorder %s19, 0
      %p61 = por %p59, %p60
      %p62 = scmp.ne.s32.totalorder %s50, %s51
      %p63 = scmp.eq.s32.totalorder %s20, 1
      %p64 = por %p62, %p63
      %p66 = scmp.ne.s32.totalorder %s51, %s65
      %p67 = scmp.eq.s32.totalorder %s20, 0
      %p68 = por %p66, %p67
      %s69 = ssub.s32 %s14, %s21
      %p70 = scmp.eq.s32.totalorder %s69, 0
      %s72 = sadd.s32 %s71, 1
      %s73 = scalar_select %p70, %s71, %s72
      %p76 = pneg %p70
      %p77 = scmp.eq.s32.totalorder %s14, 1
      %p78 = por %p76, %p77
      %p79 = scmp.ne.s32.totalorder %s71, %s74
      %p80 = scmp.eq.s32.totalorder %s14, 0
      %p81 = por %p79, %p80
      %p82 = scmp.ne.s32.totalorder %s71, %s74
      %p83 = scmp.eq.s32.totalorder %s19, 1
      %p84 = por %p82, %p83
      %p85 = scmp.ne.s32.totalorder %s74, %s75
      %p86 = scmp.eq.s32.totalorder %s19, 0
      %p87 = por %p85, %p86
      %p88 = scmp.ne.s32.totalorder %s74, %s75
      %p89 = scmp.eq.s32.totalorder %s20, 1
      %p90 = por %p88, %p89
      %p92 = scmp.ne.s32.totalorder %s75, %s91
      %p93 = scmp.eq.s32.totalorder %s20, 0
      %p94 = por %p92, %p93
      %s95 = ssub.s32 %s14, %s21
      %p96 = scmp.eq.s32.totalorder %s95, 0
      %s98 = sadd.s32 %s97, 1
      %s99 = scalar_select %p96, %s97, %s98
      %p102 = pneg %p96
      %p103 = scmp.eq.s32.totalorder %s14, 1
      %p104 = por %p102, %p103
      %p105 = scmp.ne.s32.totalorder %s97, %s100
      %p106 = scmp.eq.s32.totalorder %s14, 0
      %p107 = por %p105, %p106
      %p108 = scmp.ne.s32.totalorder %s97, %s100
      %p109 = scmp.eq.s32.totalorder %s19, 1
      %p110 = por %p108, %p109
      %p111 = scmp.ne.s32.totalorder %s100, %s101
      %p112 = scmp.eq.s32.totalorder %s19, 0
      %p113 = por %p111, %p112
      %p114 = scmp.ne.s32.totalorder %s100, %s101
      %p115 = scmp.eq.s32.totalorder %s20, 1
      %p116 = por %p114, %p115
      %p118 = scmp.ne.s32.totalorder %s101, %s117
      %p119 = scmp.eq.s32.totalorder %s20, 0
      %p120 = por %p118, %p119
      %s122 = sadd.s32 %s121, 1
      %p125 = scmp.eq.s32.totalorder %s14, 1
      %p126 = scmp.ne.s32.totalorder %s121, %s123
      %p127 = scmp.eq.s32.totalorder %s14, 0
      %p128 = por %p126, %p127
      %p129 = scmp.ne.s32.totalorder %s121, %s123
      %p130 = scmp.eq.s32.totalorder %s19, 1
      %p131 = por %p129, %p130
      %p132 = scmp.ne.s32.totalorder %s123, %s124
      %p133 = scmp.eq.s32.totalorder %s19, 0
      %p134 = por %p132, %p133
      %p135 = scmp.ne.s32.totalorder %s123, %s124
      %p136 = scmp.eq.s32.totalorder %s20, 1
      %p137 = por %p135, %p136
      %p139 = scmp.ne.s32.totalorder %s124, %s138
      %p140 = scmp.eq.s32.totalorder %s20, 0
      %p141 = por %p139, %p140
      %s143 = sadd.s32 %s142, 1
      %p146 = scmp.eq.s32.totalorder %s14, 1
      %p147 = scmp.ne.s32.totalorder %s142, %s144
      %p148 = scmp.eq.s32.totalorder %s14, 0
      %p149 = por %p147, %p148
      %p150 = scmp.ne.s32.totalorder %s142, %s144
      %p151 = scmp.eq.s32.totalorder %s19, 1
      %p152 = por %p150, %p151
      %p153 = scmp.ne.s32.totalorder %s144, %s145
      %p154 = scmp.eq.s32.totalorder %s19, 0
      %p155 = por %p153, %p154
      %p156 = scmp.ne.s32.totalorder %s144, %s145
      %p157 = scmp.eq.s32.totalorder %s20, 1
      %p158 = por %p156, %p157
      %p160 = scmp.ne.s32.totalorder %s145, %s159
      %p161 = scmp.eq.s32.totalorder %s20, 0
      %p162 = por %p160, %p161
      %s164 = sadd.s32 %s163, 1
      %p167 = scmp.eq.s32.totalorder %s14, 1
      %p168 = scmp.ne.s32.totalorder %s163, %s165
      %p169 = scmp.eq.s32.totalorder %s14, 0
      %p170 = por %p168, %p169
      %p171 = scmp.ne.s32.totalorder %s163, %s165
      %p172 = scmp.eq.s32.totalorder %s19, 1
      %p173 = por %p171, %p172
      %p174 = scmp.ne.s32.totalorder %s165, %s166
      %p175 = scmp.eq.s32.totalorder %s19, 0
      %p176 = por %p174, %p175
      %p177 = scmp.ne.s32.totalorder %s165, %s166
      %p178 = scmp.eq.s32.totalorder %s20, 1
      %p179 = por %p177, %p178
      %p181 = scmp.ne.s32.totalorder %s166, %s180
      %p182 = scmp.eq.s32.totalorder %s20, 0
      %p183 = por %p181, %p182
      %s185 = sadd.s32 %s184, 1
      %p188 = scmp.eq.s32.totalorder %s14, 1
      %p189 = scmp.ne.s32.totalorder %s184, %s186
      %p190 = scmp.eq.s32.totalorder %s14, 0
      %p191 = por %p189, %p190
      %p192 = scmp.ne.s32.totalorder %s184, %s186
      %p193 = scmp.eq.s32.totalorder %s19, 1
      %p194 = por %p192, %p193
      %p195 = scmp.ne.s32.totalorder %s186, %s187
      %p196 = scmp.eq.s32.totalorder %s19, 0
      %p197 = por %p195, %p196
      %p198 = scmp.ne.s32.totalorder %s186, %s187
      %p199 = scmp.eq.s32.totalorder %s20, 1
      %p200 = por %p198, %p199
      %p202 = scmp.ne.s32.totalorder %s187, %s201
      %p203 = scmp.eq.s32.totalorder %s20, 0
      %p204 = por %p202, %p203
      %s205 = ssub.s32 %s14, %s21
      %p206 = scmp.eq.s32.totalorder %s205, 0
      %s208 = sadd.s32 %s207, 1
      %s209 = scalar_select %p206, %s207, %s208
      %p212 = pneg %p206
      %p213 = scmp.eq.s32.totalorder %s14, 1
      %p214 = por %p212, %p213
      %p215 = scmp.ne.s32.totalorder %s207, %s210
      %p216 = scmp.eq.s32.totalorder %s14, 0
      %p217 = por %p215, %p216
      %p218 = scmp.ne.s32.totalorder %s207, %s210
      %p219 = scmp.eq.s32.totalorder %s19, 1
      %p220 = por %p218, %p219
      %p221 = scmp.ne.s32.totalorder %s210, %s211
      %p222 = scmp.eq.s32.totalorder %s19, 0
      %p223 = por %p221, %p222
      %p224 = scmp.ne.s32.totalorder %s210, %s211
      %p225 = scmp.eq.s32.totalorder %s20, 1
      %p226 = por %p224, %p225
      %p228 = scmp.ne.s32.totalorder %s211, %s227
      %p229 = scmp.eq.s32.totalorder %s20, 0
      %p230 = por %p228, %p229
      %p231 = scmp.le.s32.totalorder 1, %s14
      %p232 = scmp.lt.s32.totalorder %s14, 3
      %p233 = pnand %p231, %p232
      %p234 = pneg %p233
      // Predicated region
      $region9: #{gpts_forward.1} parent=5 // pred_check
        _
      $region10: #{gpts_forward.1} parent=5 // pred_check_branch
        %236 = sbr.rel (%p233) target = $region12
      $region11: #{gpts_forward.1} parent=5 // pred_region
        %s237 = ssub.s32 %s14, 1
        // Predicated region
        $region13: #{gpts_forward.1} parent=11 // pred_check
          %p238 = pneg %p61
        $region14: #{gpts_forward.1} parent=11 // pred_check_branch
          %240 = sbr.rel (%p238) target = $region16
        $region15: #{gpts_forward.1} parent=11 // pred_region
          _
        $region16: #{gpts_forward.1} parent=11 // pred_fallthru
          _
        // Predicated region
        $region17: #{gpts_forward.1} parent=11 // pred_check
          %p241 = pneg %p134
        $region18: #{gpts_forward.1} parent=11 // pred_check_branch
          %243 = sbr.rel (%p241) target = $region20
        $region19: #{gpts_forward.1} parent=11 // pred_region
          _
        $region20: #{gpts_forward.1} parent=11 // pred_fallthru
          _
        // Predicated region
        $region21: #{gpts_forward.1} parent=11 // pred_check
          %p244 = pneg %p155
        $region22: #{gpts_forward.1} parent=11 // pred_check_branch
          %246 = sbr.rel (%p244) target = $region24
        $region23: #{gpts_forward.1} parent=11 // pred_region
          _
        $region24: #{gpts_forward.1} parent=11 // pred_fallthru
          _
        // Predicated region
        $region25: #{gpts_forward.1} parent=11 // pred_check
          %p247 = pneg %p176
        $region26: #{gpts_forward.1} parent=11 // pred_check_branch
          %249 = sbr.rel (%p247) target = $region28
        $region27: #{gpts_forward.1} parent=11 // pred_region
          _
        $region28: #{gpts_forward.1} parent=11 // pred_fallthru
          _
        // Predicated region
        $region29: #{gpts_forward.1} parent=11 // pred_check
          %p250 = pneg %p197
        $region30: #{gpts_forward.1} parent=11 // pred_check_branch
          %252 = sbr.rel (%p250) target = $region32
        $region31: #{gpts_forward.1} parent=11 // pred_region
          _
        $region32: #{gpts_forward.1} parent=11 // pred_fallthru
          _
      $region12: #{gpts_forward.1} parent=5 // pred_fallthru
        _
      %p253 = scmp.lt.s32.totalorder %s14, 2
      // Predicated region
      $region33: #{gpts_forward.1} parent=5 // pred_check
        %p254 = pneg %p253
      $region34: #{gpts_forward.1} parent=5 // pred_check_branch
        %256 = sbr.rel (%p254) target = $region36
      $region35: #{gpts_forward.1} parent=5 // pred_region
        // Predicated region
        $region37: #{gpts_forward.1} parent=35 // pred_check
          %p257 = pneg %p34
        $region38: #{gpts_forward.1} parent=35 // pred_check_branch
          %259 = sbr.rel (%p257) target = $region40
        $region39: #{gpts_forward.1} parent=35 // pred_region
          %s260 = smul.u32 16, %s14
          %p261 = scmp.lt.s32.totalorder %s260, 31
          %s262 = scalar_select %p261, %s260, 31
          %s263 = smul.addr %s262, 4
          %s264 = scalar_lea.vmem %s0, %s263
          %s265 = smul.u32 16, %s14
        $region40: #{gpts_forward.1} parent=35 // pred_fallthru
          _
        // Predicated region
        $region41: #{gpts_forward.1} parent=35 // pred_check
          %p266 = pneg %p81
        $region42: #{gpts_forward.1} parent=35 // pred_check_branch
          %268 = sbr.rel (%p266) target = $region44
        $region43: #{gpts_forward.1} parent=35 // pred_region
          %p269 = scmp.lt.s32.totalorder %s14, 1
          %s270 = scalar_select %p269, %s14, 1
          %s271 = scalar_lea.vmem %s2, %s270
        $region44: #{gpts_forward.1} parent=35 // pred_fallthru
          _
        // Predicated region
        $region45: #{gpts_forward.1} parent=35 // pred_check
          %p272 = pneg %p107
        $region46: #{gpts_forward.1} parent=35 // pred_check_branch
          %274 = sbr.rel (%p272) target = $region48
        $region47: #{gpts_forward.1} parent=35 // pred_region
          %p275 = scmp.lt.s32.totalorder %s14, 1
          %s276 = scalar_select %p275, %s14, 1
          %s277 = scalar_lea.vmem %s3, %s276
        $region48: #{gpts_forward.1} parent=35 // pred_fallthru
          _
      $region36: #{gpts_forward.1} parent=5 // pred_fallthru
        _
      %p278 = scmp.le.s32.totalorder 1, %s14
      %p279 = scmp.lt.s32.totalorder %s14, 3
      %p280 = pnand %p278, %p279
      %p281 = pneg %p280
      // Predicated region
      $region49: #{gpts_forward.1} parent=5 // pred_check
        _
      $region50: #{gpts_forward.1} parent=5 // pred_check_branch
        %283 = sbr.rel (%p280) target = $region52
      $region51: #{gpts_forward.1} parent=5 // pred_region
        %s284 = ssub.s32 %s14, 1
        %s285 = smul.u32 16, %s19
        %p286 = scmp.lt.s32.totalorder %s285, 31
        %s287 = scalar_select %p286, %s285, 31
        %s288 = smul.addr %s287, 4
        %s289 = scalar_lea.vmem %s0, %s288
        %p290 = pneg %p40
        %p291 = pneg %p37
        %p292 = pneg %p61
        %p293 = pneg %p58
        %p294 = scmp.lt.s32.totalorder %s19, 1
        %s295 = scalar_select %p294, %s19, 1
        %s296 = scalar_lea.vmem %s2, %s295
        %p297 = pneg %p87
        %p298 = pneg %p84
        %p299 = scmp.lt.s32.totalorder %s19, 1
        %s300 = scalar_select %p299, %s19, 1
        %s301 = scalar_lea.vmem %s3, %s300
        %p302 = pneg %p113
        %p303 = pneg %p110
        %p304 = pneg %p134
        %p305 = pneg %p131
        %p306 = pneg %p155
        %p307 = pneg %p152
        %p308 = pneg %p176
        %p309 = pneg %p173
        %p310 = pneg %p197
        %p311 = pneg %p194
        %p312 = pneg %p223
        %p313 = pneg %p220
        %s314 = sand.u32 %s210, 1
        %s315 = sand.u32 %s210, 1
        %s316 = smul.addr %s315, 16
        %s317 = scalar_lea.vmem [#allocation2], %s316
        %s318 = smul.u32 16, %s19
        %p319 = scmp.lt.s32.totalorder %s318, 31
        %s320 = scalar_select %p319, %s318, 31
        %s321 = smul.addr %s320, 4
        %s322 = scalar_lea.vmem %s0, %s321
        %s323 = smul.u32 16, %s19
        %p324 = scmp.lt.s32.totalorder %s19, 1
        %s325 = scalar_select %p324, %s19, 1
        %s326 = scalar_lea.vmem %s2, %s325
        %p327 = scmp.lt.s32.totalorder %s19, 1
        %s328 = scalar_select %p327, %s19, 1
        %s329 = scalar_lea.vmem %s3, %s328
        %v331 = vld [vmem:[%s322] sm:$0xf]
        %v332 = vld [vmem:[%s322 + $0x4] sm:$0xf]
        %v333 = vld [vmem:[%s322 + $0x8] sm:$0xf]
        %v334 = vld [vmem:[%s322 + $0xc] sm:$0xf]
        %v335 = vld [vmem:[%s322 + $0x10] sm:$0xf]
        %v336 = vld [vmem:[%s322 + $0x14] sm:$0xf]
        %v337 = vld [vmem:[%s322 + $0x18] sm:$0xf]
        %v338 = vld [vmem:[%s322 + $0x1c] sm:$0xf]
        %v339 = vld [vmem:[%s322 + $0x20] sm:$0xf]
        %v340 = vld [vmem:[%s322 + $0x24] sm:$0xf]
        %v341 = vld [vmem:[%s322 + $0x28] sm:$0xf]
        %v342 = vld [vmem:[%s322 + $0x2c] sm:$0xf]
        %v343 = vld [vmem:[%s322 + $0x30] sm:$0xf]
        %v344 = vld [vmem:[%s322 + $0x34] sm:$0xf]
        %v345 = vld [vmem:[%s322 + $0x38] sm:$0xf]
        %v346 = vld [vmem:[%s322 + $0x3c] sm:$0xf]
        %v347 = vld [vmem:[%s4] sm:$0xf]
        %v348 = vld [vmem:[%s4 + $0x4] sm:$0xf]
        %v349 = vld [vmem:[%s5] sm:$0x1]
        %v351 = vlaneseq
        %v352 = vshrl.u32 %v351, 7
        %v353 = vsub.s32 0, %v352
        %v354 = vrot.slane %v349, %v353
        %v372 = vunpack.c.l.b16 %v331
        %v373 = vunpack.c.l.b16 %v332
        %v374 = vunpack.c.l.b16 %v333
        %v375 = vunpack.c.l.b16 %v334
        %v376 = vunpack.c.l.b16 %v335
        %v377 = vunpack.c.l.b16 %v336
        %v378 = vunpack.c.l.b16 %v337
        %v379 = vunpack.c.l.b16 %v338
        %v380 = vunpack.c.l.b16 %v339
        %v381 = vunpack.c.l.b16 %v340
        %v382 = vunpack.c.l.b16 %v341
        %v383 = vunpack.c.l.b16 %v342
        %v384 = vunpack.c.l.b16 %v343
        %v385 = vunpack.c.l.b16 %v344
        %v386 = vunpack.c.l.b16 %v345
        %v387 = vunpack.c.l.b16 %v346
        %v388 = vpack.c.b16 %v373, %v372
        %v389 = vpack.c.b16 %v375, %v374
        %v390 = vpack.c.b16 %v377, %v376
        %v391 = vpack.c.b16 %v379, %v378
        %v392 = vpack.c.b16 %v381, %v380
        %v393 = vpack.c.b16 %v383, %v382
        %v394 = vpack.c.b16 %v385, %v384
        %v395 = vpack.c.b16 %v387, %v386
        %v398 = vunpack.c.l.b16 %v347
        %v399 = vunpack.c.l.b16 %v348
        %v400 = vpack.c.b16 %v399, %v398
        %vm402 = vcmask 130048
        %v404 = vsel %vm402, %v388, 0
        %v407 = vsel %vm402, %v389, 0
        %v410 = vsel %vm402, %v390, 0
        %v413 = vsel %vm402, %v391, 0
        %v416 = vsel %vm402, %v392, 0
        %v419 = vsel %vm402, %v393, 0
        %v422 = vsel %vm402, %v394, 0
        %v425 = vsel %vm402, %v395, 0
        %427 = vmatprep.subr.bf16.mxu0 0
        %428 = vmatpush1.bf16.msra.mxu0 %v400
        %429 = vmatprep.subr.bf16.mxu0 0
        %430 = vmatpush1.bf16.msra.mxu0 0
        %431 = vmatprep.subr.bf16.mxu0 0
        %432 = vmatpush1.bf16.msra.mxu0 0
        %433 = vmatprep.subr.bf16.mxu0 0
        %434 = vmatpush1.bf16.msra.mxu0 0
        %435 = vmatprep.subr.bf16.mxu0 0
        %436 = vmatpush1.bf16.msra.mxu0 0
        %437 = vmatprep.subr.bf16.mxu0 0
        %438 = vmatpush1.bf16.msra.mxu0 0
        %439 = vmatprep.subr.bf16.mxu0 0
        %440 = vmatpush1.bf16.msra.mxu0 0
        %441 = vmatprep.subr.bf16.mxu0 0
        %442 = vmatpush1.bf16.msra.mxu0 0
        %443 = vmatprep.subr.bf16.mxu0 0
        %444 = vmatpush1.bf16.msra.mxu0 0
        %445 = vmatprep.subr.bf16.mxu0 0
        %446 = vmatpush1.bf16.msra.mxu0 0
        %447 = vmatprep.subr.bf16.mxu0 0
        %448 = vmatpush1.bf16.msra.mxu0 0
        %449 = vmatprep.subr.bf16.mxu0 0
        %450 = vmatpush1.bf16.msra.mxu0 0
        %451 = vmatprep.subr.bf16.mxu0 0
        %452 = vmatpush1.bf16.msra.mxu0 0
        %453 = vmatprep.subr.bf16.mxu0 0
        %454 = vmatpush1.bf16.msra.mxu0 0
        %455 = vmatprep.subr.bf16.mxu0 0
        %456 = vmatpush1.bf16.msra.mxu0 0
        %457 = vmatprep.subr.bf16.mxu0 0
        %458 = vmatpush1.bf16.msra.mxu0 0
        %459 = vmatprep.mubr.bf16.mxu0 0
        %460 = vmatmul.mubr.bf16.gmra.mrb[0].mxu0 %v404
        %v461 = vpop.f32.mrb[0].mxu0
        %v462 = vadd.f32 %v354, %v461
        %v463 = vpop.f32.mrb[0].mxu0
        %v464 = vpop.f32.mrb[0].mxu0
        %v465 = vadd.f32 %v354, %v464
        %v466 = vpop.f32.mrb[0].mxu0
        %467 = vmatprep.mubr.bf16.mxu0 0
        %468 = vmatmul.mubr.bf16.gmra.mrb[0].mxu0 %v407
        %v469 = vpop.f32.mrb[0].mxu0
        %v470 = vadd.f32 %v354, %v469
        %v471 = vpop.f32.mrb[0].mxu0
        %v472 = vpop.f32.mrb[0].mxu0
        %v473 = vadd.f32 %v354, %v472
        %v474 = vpop.f32.mrb[0].mxu0
        %475 = vmatprep.mubr.bf16.mxu0 0
        %476 = vmatmul.mubr.bf16.gmra.mrb[0].mxu0 %v410
        %v477 = vpop.f32.mrb[0].mxu0
        %v478 = vadd.f32 %v354, %v477
        %v479 = vpop.f32.mrb[0].mxu0
        %v480 = vpop.f32.mrb[0].mxu0
        %v481 = vadd.f32 %v354, %v480
        %v482 = vpop.f32.mrb[0].mxu0
        %483 = vmatprep.mubr.bf16.mxu0 0
        %484 = vmatmul.mubr.bf16.gmra.mrb[0].mxu0 %v413
        %v485 = vpop.f32.mrb[0].mxu0
        %v486 = vadd.f32 %v354, %v485
        %v487 = vpop.f32.mrb[0].mxu0
        %v488 = vpop.f32.mrb[0].mxu0
        %v489 = vadd.f32 %v354, %v488
        %v490 = vpop.f32.mrb[0].mxu0
        %491 = vmatprep.mubr.bf16.mxu0 0
        %492 = vmatmul.mubr.bf16.gmra.mrb[0].mxu0 %v416
        %v493 = vpop.f32.mrb[0].mxu0
        %v494 = vadd.f32 %v354, %v493
        %v495 = vpop.f32.mrb[0].mxu0
        %v496 = vpop.f32.mrb[0].mxu0
        %v497 = vadd.f32 %v354, %v496
        %v498 = vpop.f32.mrb[0].mxu0
        %499 = vmatprep.mubr.bf16.mxu0 0
        %500 = vmatmul.mubr.bf16.gmra.mrb[0].mxu0 %v419
        %v501 = vpop.f32.mrb[0].mxu0
        %v502 = vadd.f32 %v354, %v501
        %v503 = vpop.f32.mrb[0].mxu0
        %v504 = vpop.f32.mrb[0].mxu0
        %v505 = vadd.f32 %v354, %v504
        %v506 = vpop.f32.mrb[0].mxu0
        %507 = vmatprep.mubr.bf16.mxu0 0
        %508 = vmatmul.mubr.bf16.gmra.mrb[0].mxu0 %v422
        %v509 = vpop.f32.mrb[0].mxu0
        %v510 = vadd.f32 %v354, %v509
        %v511 = vpop.f32.mrb[0].mxu0
        %v512 = vpop.f32.mrb[0].mxu0
        %v513 = vadd.f32 %v354, %v512
        %v514 = vpop.f32.mrb[0].mxu0
        %515 = vmatprep.mubr.bf16.mxu0 0
        %516 = vmatmul.mubr.bf16.gmra.mrb[0].mxu0 %v425
        %v517 = vpop.f32.mrb[0].mxu0
        %v518 = vadd.f32 %v354, %v517
        %v519 = vpop.f32.mrb[0].mxu0
        %v520 = vpop.f32.mrb[0].mxu0
        %v521 = vadd.f32 %v354, %v520
        %v522 = vpop.f32.mrb[0].mxu0
        %523 = vdwg.mxu0
        %v524 = vpack.c.bf16 %v465, %v462
        %v525 = vpack.c.bf16 %v473, %v470
        %v526 = vpack.c.bf16 %v481, %v478
        %v527 = vpack.c.bf16 %v489, %v486
        %v528 = vpack.c.bf16 %v497, %v494
        %v529 = vpack.c.bf16 %v505, %v502
        %v530 = vpack.c.bf16 %v513, %v510
        %v531 = vpack.c.bf16 %v521, %v518
        %v532 = vld [vmem:[%s1] sm:$0xff]
        %v533 = vld [vmem:[%s1 + $0x8] sm:$0xff]
        %v534 = vld [vmem:[%s1 + $0x10] sm:$0xff]
        %v535 = vld [vmem:[%s1 + $0x18] sm:$0xff]
        %v536 = vld [vmem:[%s1 + $0x20] sm:$0xff]
        %v537 = vld [vmem:[%s1 + $0x28] sm:$0xff]
        %v538 = vld [vmem:[%s1 + $0x30] sm:$0xff]
        %v539 = vld [vmem:[%s1 + $0x38] sm:$0xff]
        %v540 = vld [vmem:[%s1 + $0x40] sm:$0xff]
        %v541 = vld [vmem:[%s1 + $0x48] sm:$0xff]
        %v542 = vld [vmem:[%s1 + $0x50] sm:$0xff]
        %v543 = vld [vmem:[%s1 + $0x58] sm:$0xff]
        %v544 = vld [vmem:[%s1 + $0x60] sm:$0xff]
        %v545 = vld [vmem:[%s1 + $0x68] sm:$0xff]
        %v546 = vld [vmem:[%s1 + $0x70] sm:$0xff]
        %v547 = vld [vmem:[%s1 + $0x78] sm:$0xff]
        %v548 = vld [vmem:[%s326] sm:$0x1]
        %v550 = vlaneseq
        %v551 = vshrl.u32 %v550, 7
        %v552 = vsub.s32 0, %v551
        %v553 = vrot.slane %v548, %v552
        %v555 = vadd.f32 %v532, %v553
        %v556 = vadd.f32 %v533, %v553
        %v557 = vadd.f32 %v534, %v553
        %v558 = vadd.f32 %v535, %v553
        %v559 = vadd.f32 %v536, %v553
        %v560 = vadd.f32 %v537, %v553
        %v561 = vadd.f32 %v538, %v553
        %v562 = vadd.f32 %v539, %v553
        %v563 = vadd.f32 %v540, %v553
        %v564 = vadd.f32 %v541, %v553
        %v565 = vadd.f32 %v542, %v553
        %v566 = vadd.f32 %v543, %v553
        %v567 = vadd.f32 %v544, %v553
        %v568 = vadd.f32 %v545, %v553
        %v569 = vadd.f32 %v546, %v553
        %v570 = vadd.f32 %v547, %v553
        %v571 = vld [vmem:[%s6] sm:$0xf]
        %v572 = vld [vmem:[%s6 + $0x4] sm:$0xf]
        %581 = vrot.lane.b32.xlu0 %v524, 96
        %v582 = vpop.permute.xlu0 %581
        %583 = vrot.lane.b32.xlu0 %v525, 96
        %v584 = vpop.permute.xlu0 %583
        %585 = vrot.lane.b32.xlu0 %v526, 96
        %v586 = vpop.permute.xlu0 %585
        %587 = vrot.lane.b32.xlu0 %v527, 96
        %v588 = vpop.permute.xlu0 %587
        %589 = vrot.lane.b32.xlu0 %v528, 96
        %v590 = vpop.permute.xlu0 %589
        %591 = vrot.lane.b32.xlu0 %v529, 96
        %v592 = vpop.permute.xlu0 %591
        %593 = vrot.lane.b32.xlu0 %v530, 96
        %v594 = vpop.permute.xlu0 %593
        %595 = vrot.lane.b32.xlu0 %v531, 96
        %v596 = vpop.permute.xlu0 %595
        %v598 = vsel %vm402, %v524, 0
        %v601 = vsel %vm402, %v525, 0
        %v604 = vsel %vm402, %v526, 0
        %v607 = vsel %vm402, %v527, 0
        %v610 = vsel %vm402, %v528, 0
        %v613 = vsel %vm402, %v529, 0
        %v616 = vsel %vm402, %v530, 0
        %v619 = vsel %vm402, %v531, 0
        %v622 = vsel %vm402, %v582, 0
        %v625 = vsel %vm402, %v584, 0
        %v628 = vsel %vm402, %v586, 0
        %v631 = vsel %vm402, %v588, 0
        %v634 = vsel %vm402, %v590, 0
        %v637 = vsel %vm402, %v592, 0
        %v640 = vsel %vm402, %v594, 0
        %v643 = vsel %vm402, %v596, 0
        %645 = vmatprep.subr.bf16.mxu0 0
        %646 = vmatpush1.bf16.xpose.msra.mxu0 %v622
        %647 = vmatprep.subr.bf16.mxu0 0
        %648 = vmatpush1.bf16.xpose.msra.mxu0 %v625
        %649 = vmatprep.subr.bf16.mxu0 0
        %650 = vmatpush1.bf16.xpose.msra.mxu0 %v628
        %651 = vmatprep.subr.bf16.mxu0 0
        %652 = vmatpush1.bf16.xpose.msra.mxu0 %v631
        %653 = vmatprep.subr.bf16.mxu0 0
        %654 = vmatpush1.bf16.xpose.msra.mxu0 %v634
        %655 = vmatprep.subr.bf16.mxu0 0
        %656 = vmatpush1.bf16.xpose.msra.mxu0 %v637
        %657 = vmatprep.subr.bf16.mxu0 0
        %658 = vmatpush1.bf16.xpose.msra.mxu0 %v640
        %659 = vmatprep.subr.bf16.mxu0 0
        %660 = vmatpush1.bf16.xpose.msra.mxu0 %v643
        %661 = vmatprep.subr.bf16.mxu0 0
        %662 = vmatpush1.bf16.xpose.msra.mxu0 0
        %663 = vmatprep.subr.bf16.mxu0 0
        %664 = vmatpush1.bf16.xpose.msra.mxu0 0
        %665 = vmatprep.subr.bf16.mxu0 0
        %666 = vmatpush1.bf16.xpose.msra.mxu0 0
        %667 = vmatprep.subr.bf16.mxu0 0
        %668 = vmatpush1.bf16.xpose.msra.mxu0 0
        %669 = vmatprep.subr.bf16.mxu0 0
        %670 = vmatpush1.bf16.xpose.msra.mxu0 0
        %671 = vmatprep.subr.bf16.mxu0 0
        %672 = vmatpush1.bf16.xpose.msra.mxu0 0
        %673 = vmatprep.subr.bf16.mxu0 0
        %674 = vmatpush1.bf16.xpose.msra.mxu0 0
        %675 = vmatprep.subr.bf16.mxu0 0
        %676 = vmatpush1.bf16.xpose.msra.mxu0 0
        %677 = vmatprep.mubr.bf16.mxu0 0
        %678 = vmatmul.mubr.bf16.gmra.mrb[0].mxu0 %v598
        %v679 = vpop.f32.mrb[0].mxu0
        %v680 = vadd.f32 %v555, %v679
        %v681 = vpop.f32.mrb[0].mxu0
        %v682 = vpop.f32.mrb[0].mxu0
        %v683 = vadd.f32 %v556, %v682
        %v684 = vpop.f32.mrb[0].mxu0
        %685 = vmatprep.mubr.bf16.mxu0 0
        %686 = vmatmul.mubr.bf16.gmra.mrb[0].mxu0 %v601
        %v687 = vpop.f32.mrb[0].mxu0
        %v688 = vadd.f32 %v557, %v687
        %v689 = vpop.f32.mrb[0].mxu0
        %v690 = vpop.f32.mrb[0].mxu0
        %v691 = vadd.f32 %v558, %v690
        %v692 = vpop.f32.mrb[0].mxu0
        %693 = vmatprep.mubr.bf16.mxu0 0
        %694 = vmatmul.mubr.bf16.gmra.mrb[0].mxu0 %v604
        %v695 = vpop.f32.mrb[0].mxu0
        %v696 = vadd.f32 %v559, %v695
        %v697 = vpop.f32.mrb[0].mxu0
        %v698 = vpop.f32.mrb[0].mxu0
        %v699 = vadd.f32 %v560, %v698
        %v700 = vpop.f32.mrb[0].mxu0
        %701 = vmatprep.mubr.bf16.mxu0 0
        %702 = vmatmul.mubr.bf16.gmra.mrb[0].mxu0 %v607
        %v703 = vpop.f32.mrb[0].mxu0
        %v704 = vadd.f32 %v561, %v703
        %v705 = vpop.f32.mrb[0].mxu0
        %v706 = vpop.f32.mrb[0].mxu0
        %v707 = vadd.f32 %v562, %v706
        %v708 = vpop.f32.mrb[0].mxu0
        %709 = vmatprep.mubr.bf16.mxu0 0
        %710 = vmatmul.mubr.bf16.gmra.mrb[0].mxu0 %v610
        %v711 = vpop.f32.mrb[0].mxu0
        %v712 = vadd.f32 %v563, %v711
        %v713 = vpop.f32.mrb[0].mxu0
        %v714 = vpop.f32.mrb[0].mxu0
        %v715 = vadd.f32 %v564, %v714
        %v716 = vpop.f32.mrb[0].mxu0
        %717 = vmatprep.mubr.bf16.mxu0 0
        %718 = vmatmul.mubr.bf16.gmra.mrb[0].mxu0 %v613
        %v719 = vpop.f32.mrb[0].mxu0
        %v720 = vadd.f32 %v565, %v719
        %v721 = vpop.f32.mrb[0].mxu0
        %v722 = vpop.f32.mrb[0].mxu0
        %v723 = vadd.f32 %v566, %v722
        %v724 = vpop.f32.mrb[0].mxu0
        %725 = vmatprep.mubr.bf16.mxu0 0
        %726 = vmatmul.mubr.bf16.gmra.mrb[0].mxu0 %v616
        %v727 = vpop.f32.mrb[0].mxu0
        %v728 = vadd.f32 %v567, %v727
        %v729 = vpop.f32.mrb[0].mxu0
        %v730 = vpop.f32.mrb[0].mxu0
        %v731 = vadd.f32 %v568, %v730
        %v732 = vpop.f32.mrb[0].mxu0
        %733 = vmatprep.mubr.bf16.mxu0 0
        %734 = vmatmul.mubr.bf16.gmra.mrb[0].mxu0 %v619
        %v735 = vpop.f32.mrb[0].mxu0
        %v736 = vadd.f32 %v569, %v735
        %v737 = vpop.f32.mrb[0].mxu0
        %v738 = vpop.f32.mrb[0].mxu0
        %v739 = vadd.f32 %v570, %v738
        %v740 = vpop.f32.mrb[0].mxu0
        %741 = vdwg.mxu0
        %742 = vmax.xlane.f32.xlu0 %v680
        %v743 = vpop.xlane.xlu0 %742
        %744 = vmax.xlane.f32.xlu0 %v683
        %v745 = vpop.xlane.xlu0 %744
        %746 = vmax.xlane.f32.xlu0 %v688
        %v747 = vpop.xlane.xlu0 %746
        %748 = vmax.xlane.f32.xlu0 %v691
        %v749 = vpop.xlane.xlu0 %748
        %750 = vmax.xlane.f32.xlu0 %v696
        %v751 = vpop.xlane.xlu0 %750
        %752 = vmax.xlane.f32.xlu0 %v699
        %v753 = vpop.xlane.xlu0 %752
        %754 = vmax.xlane.f32.xlu0 %v704
        %v755 = vpop.xlane.xlu0 %754
        %756 = vmax.xlane.f32.xlu0 %v707
        %v757 = vpop.xlane.xlu0 %756
        %758 = vmax.xlane.f32.xlu0 %v712
        %v759 = vpop.xlane.xlu0 %758
        %760 = vmax.xlane.f32.xlu0 %v715
        %v761 = vpop.xlane.xlu0 %760
        %762 = vmax.xlane.f32.xlu0 %v720
        %v763 = vpop.xlane.xlu0 %762
        %764 = vmax.xlane.f32.xlu0 %v723
        %v765 = vpop.xlane.xlu0 %764
        %766 = vmax.xlane.f32.xlu0 %v728
        %v767 = vpop.xlane.xlu0 %766
        %768 = vmax.xlane.f32.xlu0 %v731
        %v769 = vpop.xlane.xlu0 %768
        %770 = vmax.xlane.f32.xlu0 %v736
        %v771 = vpop.xlane.xlu0 %770
        %772 = vmax.xlane.f32.xlu0 %v739
        %v773 = vpop.xlane.xlu0 %772
        %v774 = vsub.f32 %v680, %v743
        %v775 = vsub.f32 %v683, %v745
        %v776 = vsub.f32 %v688, %v747
        %v777 = vsub.f32 %v691, %v749
        %v778 = vsub.f32 %v696, %v751
        %v779 = vsub.f32 %v699, %v753
        %v780 = vsub.f32 %v704, %v755
        %v781 = vsub.f32 %v707, %v757
        %v782 = vsub.f32 %v712, %v759
        %v783 = vsub.f32 %v715, %v761
        %v784 = vsub.f32 %v720, %v763
        %v785 = vsub.f32 %v723, %v765
        %v786 = vsub.f32 %v728, %v767
        %v787 = vsub.f32 %v731, %v769
        %v788 = vsub.f32 %v736, %v771
        %v789 = vsub.f32 %v739, %v773
        %v790 = vmul.f32 %v774, 1.442695
        %v791 = vpow.pop %v790
        %v792 = vmul.f32 %v775, 1.442695
        %v793 = vpow.pop %v792
        %v794 = vmul.f32 %v776, 1.442695
        %v795 = vpow.pop %v794
        %v796 = vmul.f32 %v777, 1.442695
        %v797 = vpow.pop %v796
        %v798 = vmul.f32 %v778, 1.442695
        %v799 = vpow.pop %v798
        %v800 = vmul.f32 %v779, 1.442695
        %v801 = vpow.pop %v800
        %v802 = vmul.f32 %v780, 1.442695
        %v803 = vpow.pop %v802
        %v804 = vmul.f32 %v781, 1.442695
        %v805 = vpow.pop %v804
        %v806 = vmul.f32 %v782, 1.442695
        %v807 = vpow.pop %v806
        %v808 = vmul.f32 %v783, 1.442695
        %v809 = vpow.pop %v808
        %v810 = vmul.f32 %v784, 1.442695
        %v811 = vpow.pop %v810
        %v812 = vmul.f32 %v785, 1.442695
        %v813 = vpow.pop %v812
        %v814 = vmul.f32 %v786, 1.442695
        %v815 = vpow.pop %v814
        %v816 = vmul.f32 %v787, 1.442695
        %v817 = vpow.pop %v816
        %v818 = vmul.f32 %v788, 1.442695
        %v819 = vpow.pop %v818
        %v820 = vmul.f32 %v789, 1.442695
        %v821 = vpow.pop %v820
        %822 = vadd.xlane.f32.xlu0 %v791
        %v823 = vpop.xlane.xlu0 %822
        %824 = vadd.xlane.f32.xlu0 %v793
        %v825 = vpop.xlane.xlu0 %824
        %826 = vadd.xlane.f32.xlu0 %v795
        %v827 = vpop.xlane.xlu0 %826
        %828 = vadd.xlane.f32.xlu0 %v797
        %v829 = vpop.xlane.xlu0 %828
        %830 = vadd.xlane.f32.xlu0 %v799
        %v831 = vpop.xlane.xlu0 %830
        %832 = vadd.xlane.f32.xlu0 %v801
        %v833 = vpop.xlane.xlu0 %832
        %834 = vadd.xlane.f32.xlu0 %v803
        %v835 = vpop.xlane.xlu0 %834
        %836 = vadd.xlane.f32.xlu0 %v805
        %v837 = vpop.xlane.xlu0 %836
        %838 = vadd.xlane.f32.xlu0 %v807
        %v839 = vpop.xlane.xlu0 %838
        %840 = vadd.xlane.f32.xlu0 %v809
        %v841 = vpop.xlane.xlu0 %840
        %842 = vadd.xlane.f32.xlu0 %v811
        %v843 = vpop.xlane.xlu0 %842
        %844 = vadd.xlane.f32.xlu0 %v813
        %v845 = vpop.xlane.xlu0 %844
        %846 = vadd.xlane.f32.xlu0 %v815
        %v847 = vpop.xlane.xlu0 %846
        %848 = vadd.xlane.f32.xlu0 %v817
        %v849 = vpop.xlane.xlu0 %848
        %850 = vadd.xlane.f32.xlu0 %v819
        %v851 = vpop.xlane.xlu0 %850
        %852 = vadd.xlane.f32.xlu0 %v821
        %v853 = vpop.xlane.xlu0 %852
        %v854 = vpack.c.bf16 %v793, %v791
        %v855 = vpack.c.bf16 %v797, %v795
        %v856 = vpack.c.bf16 %v801, %v799
        %v857 = vpack.c.bf16 %v805, %v803
        %v858 = vpack.c.bf16 %v809, %v807
        %v859 = vpack.c.bf16 %v813, %v811
        %v860 = vpack.c.bf16 %v817, %v815
        %v861 = vpack.c.bf16 %v821, %v819
        %862 = vrot.lane.b32.xlu0 %v524, 64
        %v863 = vpop.permute.xlu0 %862
        %864 = vrot.lane.b32.xlu0 %v525, 64
        %v865 = vpop.permute.xlu0 %864
        %866 = vrot.lane.b32.xlu0 %v526, 64
        %v867 = vpop.permute.xlu0 %866
        %868 = vrot.lane.b32.xlu0 %v527, 64
        %v869 = vpop.permute.xlu0 %868
        %870 = vrot.lane.b32.xlu0 %v528, 64
        %v871 = vpop.permute.xlu0 %870
        %872 = vrot.lane.b32.xlu0 %v529, 64
        %v873 = vpop.permute.xlu0 %872
        %874 = vrot.lane.b32.xlu0 %v530, 64
        %v875 = vpop.permute.xlu0 %874
        %876 = vrot.lane.b32.xlu0 %v531, 64
        %v877 = vpop.permute.xlu0 %876
        %886 = vmatprep.subr.bf16.mxu0 0
        %887 = vmatpush1.bf16.msra.mxu0 %v863
        %888 = vmatprep.subr.bf16.mxu0 0
        %889 = vmatpush1.bf16.msra.mxu0 %v865
        %890 = vmatprep.subr.bf16.mxu0 0
        %891 = vmatpush1.bf16.msra.mxu0 %v867
        %892 = vmatprep.subr.bf16.mxu0 0
        %893 = vmatpush1.bf16.msra.mxu0 %v869
        %894 = vmatprep.subr.bf16.mxu0 0
        %895 = vmatpush1.bf16.msra.mxu0 %v871
        %896 = vmatprep.subr.bf16.mxu0 0
        %897 = vmatpush1.bf16.msra.mxu0 %v873
        %898 = vmatprep.subr.bf16.mxu0 0
        %899 = vmatpush1.bf16.msra.mxu0 %v875
        %900 = vmatprep.subr.bf16.mxu0 0
        %901 = vmatpush1.bf16.msra.mxu0 %v877
        %902 = vmatprep.subr.bf16.mxu0 0
        %903 = vmatpush1.bf16.msra.mxu0 0
        %904 = vmatprep.subr.bf16.mxu0 0
        %905 = vmatpush1.bf16.msra.mxu0 0
        %906 = vmatprep.subr.bf16.mxu0 0
        %907 = vmatpush1.bf16.msra.mxu0 0
        %908 = vmatprep.subr.bf16.mxu0 0
        %909 = vmatpush1.bf16.msra.mxu0 0
        %910 = vmatprep.subr.bf16.mxu0 0
        %911 = vmatpush1.bf16.msra.mxu0 0
        %912 = vmatprep.subr.bf16.mxu0 0
        %913 = vmatpush1.bf16.msra.mxu0 0
        %914 = vmatprep.subr.bf16.mxu0 0
        %915 = vmatpush1.bf16.msra.mxu0 0
        %916 = vmatprep.subr.bf16.mxu0 0
        %917 = vmatpush1.bf16.msra.mxu0 0
        %918 = vmatprep.mubr.bf16.mxu0 0
        %919 = vmatmul.mubr.bf16.gmra.mrb[0].mxu0 %v854
        %v920 = vpop.f32.mrb[0].mxu0
        %v921 = vadd.f32 0.0, %v920
        %v922 = vpop.f32.mrb[0].mxu0
        %v923 = vpop.f32.mrb[0].mxu0
        %v924 = vadd.f32 0.0, %v923
        %v925 = vpop.f32.mrb[0].mxu0
        %926 = vmatprep.mubr.bf16.mxu0 0
        %927 = vmatmul.mubr.bf16.gmra.mrb[0].mxu0 %v855
        %v928 = vpop.f32.mrb[0].mxu0
        %v929 = vadd.f32 0.0, %v928
        %v930 = vpop.f32.mrb[0].mxu0
        %v931 = vpop.f32.mrb[0].mxu0
        %v932 = vadd.f32 0.0, %v931
        %v933 = vpop.f32.mrb[0].mxu0
        %934 = vmatprep.mubr.bf16.mxu0 0
        %935 = vmatmul.mubr.bf16.gmra.mrb[0].mxu0 %v856
        %v936 = vpop.f32.mrb[0].mxu0
        %v937 = vadd.f32 0.0, %v936
        %v938 = vpop.f32.mrb[0].mxu0
        %v939 = vpop.f32.mrb[0].mxu0
        %v940 = vadd.f32 0.0, %v939
        %v941 = vpop.f32.mrb[0].mxu0
        %942 = vmatprep.mubr.bf16.mxu0 0
        %943 = vmatmul.mubr.bf16.gmra.mrb[0].mxu0 %v857
        %v944 = vpop.f32.mrb[0].mxu0
        %v945 = vadd.f32 0.0, %v944
        %v946 = vpop.f32.mrb[0].mxu0
        %v947 = vpop.f32.mrb[0].mxu0
        %v948 = vadd.f32 0.0, %v947
        %v949 = vpop.f32.mrb[0].mxu0
        %950 = vmatprep.mubr.bf16.mxu0 0
        %951 = vmatmul.mubr.bf16.gmra.mrb[0].mxu0 %v858
        %v952 = vpop.f32.mrb[0].mxu0
        %v953 = vadd.f32 0.0, %v952
        %v954 = vpop.f32.mrb[0].mxu0
        %v955 = vpop.f32.mrb[0].mxu0
        %v956 = vadd.f32 0.0, %v955
        %v957 = vpop.f32.mrb[0].mxu0
        %958 = vmatprep.mubr.bf16.mxu0 0
        %959 = vmatmul.mubr.bf16.gmra.mrb[0].mxu0 %v859
        %v960 = vpop.f32.mrb[0].mxu0
        %v961 = vadd.f32 0.0, %v960
        %v962 = vpop.f32.mrb[0].mxu0
        %v963 = vpop.f32.mrb[0].mxu0
        %v964 = vadd.f32 0.0, %v963
        %v965 = vpop.f32.mrb[0].mxu0
        %966 = vmatprep.mubr.bf16.mxu0 0
        %967 = vmatmul.mubr.bf16.gmra.mrb[0].mxu0 %v860
        %v968 = vpop.f32.mrb[0].mxu0
        %v969 = vadd.f32 0.0, %v968
        %v970 = vpop.f32.mrb[0].mxu0
        %v971 = vpop.f32.mrb[0].mxu0
        %v972 = vadd.f32 0.0, %v971
        %v973 = vpop.f32.mrb[0].mxu0
        %974 = vmatprep.mubr.bf16.mxu0 0
        %975 = vmatmul.mubr.bf16.gmra.mrb[0].mxu0 %v861
        %v976 = vpop.f32.mrb[0].mxu0
        %v977 = vadd.f32 0.0, %v976
        %v978 = vpop.f32.mrb[0].mxu0
        %v979 = vpop.f32.mrb[0].mxu0
        %v980 = vadd.f32 0.0, %v979
        %v981 = vpop.f32.mrb[0].mxu0
        %982 = vdwg.mxu0
        %v983 = vrcp.pop %v823
        %v984 = vrcp.pop %v825
        %v985 = vrcp.pop %v827
        %v986 = vrcp.pop %v829
        %v987 = vrcp.pop %v831
        %v988 = vrcp.pop %v833
        %v989 = vrcp.pop %v835
        %v990 = vrcp.pop %v837
        %v991 = vrcp.pop %v839
        %v992 = vrcp.pop %v841
        %v993 = vrcp.pop %v843
        %v994 = vrcp.pop %v845
        %v995 = vrcp.pop %v847
        %v996 = vrcp.pop %v849
        %v997 = vrcp.pop %v851
        %v998 = vrcp.pop %v853
        %v999 = vmul.f32 %v921, %v983
        %v1000 = vmul.f32 %v924, %v984
        %v1001 = vmul.f32 %v929, %v985
        %v1002 = vmul.f32 %v932, %v986
        %v1003 = vmul.f32 %v937, %v987
        %v1004 = vmul.f32 %v940, %v988
        %v1005 = vmul.f32 %v945, %v989
        %v1006 = vmul.f32 %v948, %v990
        %v1007 = vmul.f32 %v953, %v991
        %v1008 = vmul.f32 %v956, %v992
        %v1009 = vmul.f32 %v961, %v993
        %v1010 = vmul.f32 %v964, %v994
        %v1011 = vmul.f32 %v969, %v995
        %v1012 = vmul.f32 %v972, %v996
        %v1013 = vmul.f32 %v977, %v997
        %v1014 = vmul.f32 %v980, %v998
        %v1015 = vpack.c.bf16 %v1000, %v999
        %v1016 = vpack.c.bf16 %v1002, %v1001
        %v1017 = vpack.c.bf16 %v1004, %v1003
        %v1018 = vpack.c.bf16 %v1006, %v1005
        %v1019 = vpack.c.bf16 %v1008, %v1007
        %v1020 = vpack.c.bf16 %v1010, %v1009
        %v1021 = vpack.c.bf16 %v1012, %v1011
        %v1022 = vpack.c.bf16 %v1014, %v1013
        %1023 = vrot.lane.b32.xlu0 %v524, 112
        %v1024 = vpop.permute.xlu0 %1023
        %1025 = vrot.lane.b32.xlu0 %v525, 112
        %v1026 = vpop.permute.xlu0 %1025
        %1027 = vrot.lane.b32.xlu0 %v526, 112
        %v1028 = vpop.permute.xlu0 %1027
        %1029 = vrot.lane.b32.xlu0 %v527, 112
        %v1030 = vpop.permute.xlu0 %1029
        %1031 = vrot.lane.b32.xlu0 %v528, 112
        %v1032 = vpop.permute.xlu0 %1031
        %1033 = vrot.lane.b32.xlu0 %v529, 112
        %v1034 = vpop.permute.xlu0 %1033
        %1035 = vrot.lane.b32.xlu0 %v530, 112
        %v1036 = vpop.permute.xlu0 %1035
        %1037 = vrot.lane.b32.xlu0 %v531, 112
        %v1038 = vpop.permute.xlu0 %1037
        %1039 = vrot.lane.b32.xlu0 %v524, 80
        %v1040 = vpop.permute.xlu0 %1039
        %1041 = vrot.lane.b32.xlu0 %v525, 80
        %v1042 = vpop.permute.xlu0 %1041
        %1043 = vrot.lane.b32.xlu0 %v526, 80
        %v1044 = vpop.permute.xlu0 %1043
        %1045 = vrot.lane.b32.xlu0 %v527, 80
        %v1046 = vpop.permute.xlu0 %1045
        %1047 = vrot.lane.b32.xlu0 %v528, 80
        %v1048 = vpop.permute.xlu0 %1047
        %1049 = vrot.lane.b32.xlu0 %v529, 80
        %v1050 = vpop.permute.xlu0 %1049
        %1051 = vrot.lane.b32.xlu0 %v530, 80
        %v1052 = vpop.permute.xlu0 %1051
        %1053 = vrot.lane.b32.xlu0 %v531, 80
        %v1054 = vpop.permute.xlu0 %1053
        %v1056 = vsel %vm402, %v1024, 0
        %v1059 = vsel %vm402, %v1026, 0
        %v1062 = vsel %vm402, %v1028, 0
        %v1065 = vsel %vm402, %v1030, 0
        %v1068 = vsel %vm402, %v1032, 0
        %v1071 = vsel %vm402, %v1034, 0
        %v1074 = vsel %vm402, %v1036, 0
        %v1077 = vsel %vm402, %v1038, 0
        %v1080 = vsel %vm402, %v1040, 0
        %v1083 = vsel %vm402, %v1042, 0
        %v1086 = vsel %vm402, %v1044, 0
        %v1089 = vsel %vm402, %v1046, 0
        %v1092 = vsel %vm402, %v1048, 0
        %v1095 = vsel %vm402, %v1050, 0
        %v1098 = vsel %vm402, %v1052, 0
        %v1101 = vsel %vm402, %v1054, 0
        %1103 = vmatprep.subr.bf16.mxu0 0
        %1104 = vmatpush1.bf16.xpose.msra.mxu0 %v1080
        %1105 = vmatprep.subr.bf16.mxu0 0
        %1106 = vmatpush1.bf16.xpose.msra.mxu0 %v1083
        %1107 = vmatprep.subr.bf16.mxu0 0
        %1108 = vmatpush1.bf16.xpose.msra.mxu0 %v1086
        %1109 = vmatprep.subr.bf16.mxu0 0
        %1110 = vmatpush1.bf16.xpose.msra.mxu0 %v1089
        %1111 = vmatprep.subr.bf16.mxu0 0
        %1112 = vmatpush1.bf16.xpose.msra.mxu0 %v1092
        %1113 = vmatprep.subr.bf16.mxu0 0
        %1114 = vmatpush1.bf16.xpose.msra.mxu0 %v1095
        %1115 = vmatprep.subr.bf16.mxu0 0
        %1116 = vmatpush1.bf16.xpose.msra.mxu0 %v1098
        %1117 = vmatprep.subr.bf16.mxu0 0
        %1118 = vmatpush1.bf16.xpose.msra.mxu0 %v1101
        %1119 = vmatprep.subr.bf16.mxu0 0
        %1120 = vmatpush1.bf16.xpose.msra.mxu0 0
        %1121 = vmatprep.subr.bf16.mxu0 0
        %1122 = vmatpush1.bf16.xpose.msra.mxu0 0
        %1123 = vmatprep.subr.bf16.mxu0 0
        %1124 = vmatpush1.bf16.xpose.msra.mxu0 0
        %1125 = vmatprep.subr.bf16.mxu0 0
        %1126 = vmatpush1.bf16.xpose.msra.mxu0 0
        %1127 = vmatprep.subr.bf16.mxu0 0
        %1128 = vmatpush1.bf16.xpose.msra.mxu0 0
        %1129 = vmatprep.subr.bf16.mxu0 0
        %1130 = vmatpush1.bf16.xpose.msra.mxu0 0
        %1131 = vmatprep.subr.bf16.mxu0 0
        %1132 = vmatpush1.bf16.xpose.msra.mxu0 0
        %1133 = vmatprep.subr.bf16.mxu0 0
        %1134 = vmatpush1.bf16.xpose.msra.mxu0 0
        %1135 = vmatprep.mubr.bf16.mxu0 0
        %1136 = vmatmul.mubr.bf16.gmra.mrb[0].mxu0 %v1056
        %v1137 = vpop.f32.mrb[0].mxu0
        %v1138 = vadd.f32 %v555, %v1137
        %v1139 = vpop.f32.mrb[0].mxu0
        %v1140 = vpop.f32.mrb[0].mxu0
        %v1141 = vadd.f32 %v556, %v1140
        %v1142 = vpop.f32.mrb[0].mxu0
        %1143 = vmatprep.mubr.bf16.mxu0 0
        %1144 = vmatmul.mubr.bf16.gmra.mrb[0].mxu0 %v1059
        %v1145 = vpop.f32.mrb[0].mxu0
        %v1146 = vadd.f32 %v557, %v1145
        %v1147 = vpop.f32.mrb[0].mxu0
        %v1148 = vpop.f32.mrb[0].mxu0
        %v1149 = vadd.f32 %v558, %v1148
        %v1150 = vpop.f32.mrb[0].mxu0
        %1151 = vmatprep.mubr.bf16.mxu0 0
        %1152 = vmatmul.mubr.bf16.gmra.mrb[0].mxu0 %v1062
        %v1153 = vpop.f32.mrb[0].mxu0
        %v1154 = vadd.f32 %v559, %v1153
        %v1155 = vpop.f32.mrb[0].mxu0
        %v1156 = vpop.f32.mrb[0].mxu0
        %v1157 = vadd.f32 %v560, %v1156
        %v1158 = vpop.f32.mrb[0].mxu0
        %1159 = vmatprep.mubr.bf16.mxu0 0
        %1160 = vmatmul.mubr.bf16.gmra.mrb[0].mxu0 %v1065
        %v1161 = vpop.f32.mrb[0].mxu0
        %v1162 = vadd.f32 %v561, %v1161
        %v1163 = vpop.f32.mrb[0].mxu0
        %v1164 = vpop.f32.mrb[0].mxu0
        %v1165 = vadd.f32 %v562, %v1164
        %v1166 = vpop.f32.mrb[0].mxu0
        %1167 = vmatprep.mubr.bf16.mxu0 0
        %1168 = vmatmul.mubr.bf16.gmra.mrb[0].mxu0 %v1068
        %v1169 = vpop.f32.mrb[0].mxu0
        %v1170 = vadd.f32 %v563, %v1169
        %v1171 = vpop.f32.mrb[0].mxu0
        %v1172 = vpop.f32.mrb[0].mxu0
        %v1173 = vadd.f32 %v564, %v1172
        %v1174 = vpop.f32.mrb[0].mxu0
        %1175 = vmatprep.mubr.bf16.mxu0 0
        %1176 = vmatmul.mubr.bf16.gmra.mrb[0].mxu0 %v1071
        %v1177 = vpop.f32.mrb[0].mxu0
        %v1178 = vadd.f32 %v565, %v1177
        %v1179 = vpop.f32.mrb[0].mxu0
        %v1180 = vpop.f32.mrb[0].mxu0
        %v1181 = vadd.f32 %v566, %v1180
        %v1182 = vpop.f32.mrb[0].mxu0
        %1183 = vmatprep.mubr.bf16.mxu0 0
        %1184 = vmatmul.mubr.bf16.gmra.mrb[0].mxu0 %v1074
        %v1185 = vpop.f32.mrb[0].mxu0
        %v1186 = vadd.f32 %v567, %v1185
        %v1187 = vpop.f32.mrb[0].mxu0
        %v1188 = vpop.f32.mrb[0].mxu0
        %v1189 = vadd.f32 %v568, %v1188
        %v1190 = vpop.f32.mrb[0].mxu0
        %1191 = vmatprep.mubr.bf16.mxu0 0
        %1192 = vmatmul.mubr.bf16.gmra.mrb[0].mxu0 %v1077
        %v1193 = vpop.f32.mrb[0].mxu0
        %v1194 = vadd.f32 %v569, %v1193
        %v1195 = vpop.f32.mrb[0].mxu0
        %v1196 = vpop.f32.mrb[0].mxu0
        %v1197 = vadd.f32 %v570, %v1196
        %v1198 = vpop.f32.mrb[0].mxu0
        %1199 = vdwg.mxu0
        %1200 = vmax.xlane.f32.xlu0 %v1138
        %v1201 = vpop.xlane.xlu0 %1200
        %1202 = vmax.xlane.f32.xlu0 %v1141
        %v1203 = vpop.xlane.xlu0 %1202
        %1204 = vmax.xlane.f32.xlu0 %v1146
        %v1205 = vpop.xlane.xlu0 %1204
        %1206 = vmax.xlane.f32.xlu0 %v1149
        %v1207 = vpop.xlane.xlu0 %1206
        %1208 = vmax.xlane.f32.xlu0 %v1154
        %v1209 = vpop.xlane.xlu0 %1208
        %1210 = vmax.xlane.f32.xlu0 %v1157
        %v1211 = vpop.xlane.xlu0 %1210
        %1212 = vmax.xlane.f32.xlu0 %v1162
        %v1213 = vpop.xlane.xlu0 %1212
        %1214 = vmax.xlane.f32.xlu0 %v1165
        %v1215 = vpop.xlane.xlu0 %1214
        %1216 = vmax.xlane.f32.xlu0 %v1170
        %v1217 = vpop.xlane.xlu0 %1216
        %1218 = vmax.xlane.f32.xlu0 %v1173
        %v1219 = vpop.xlane.xlu0 %1218
        %1220 = vmax.xlane.f32.xlu0 %v1178
        %v1221 = vpop.xlane.xlu0 %1220
        %1222 = vmax.xlane.f32.xlu0 %v1181
        %v1223 = vpop.xlane.xlu0 %1222
        %1224 = vmax.xlane.f32.xlu0 %v1186
        %v1225 = vpop.xlane.xlu0 %1224
        %1226 = vmax.xlane.f32.xlu0 %v1189
        %v1227 = vpop.xlane.xlu0 %1226
        %1228 = vmax.xlane.f32.xlu0 %v1194
        %v1229 = vpop.xlane.xlu0 %1228
        %1230 = vmax.xlane.f32.xlu0 %v1197
        %v1231 = vpop.xlane.xlu0 %1230
        %v1232 = vsub.f32 %v1138, %v1201
        %v1233 = vsub.f32 %v1141, %v1203
        %v1234 = vsub.f32 %v1146, %v1205
        %v1235 = vsub.f32 %v1149, %v1207
        %v1236 = vsub.f32 %v1154, %v1209
        %v1237 = vsub.f32 %v1157, %v1211
        %v1238 = vsub.f32 %v1162, %v1213
        %v1239 = vsub.f32 %v1165, %v1215
        %v1240 = vsub.f32 %v1170, %v1217
        %v1241 = vsub.f32 %v1173, %v1219
        %v1242 = vsub.f32 %v1178, %v1221
        %v1243 = vsub.f32 %v1181, %v1223
        %v1244 = vsub.f32 %v1186, %v1225
        %v1245 = vsub.f32 %v1189, %v1227
        %v1246 = vsub.f32 %v1194, %v1229
        %v1247 = vsub.f32 %v1197, %v1231
        %v1248 = vmul.f32 %v1232, 1.442695
        %v1249 = vpow.pop %v1248
        %v1250 = vmul.f32 %v1233, 1.442695
        %v1251 = vpow.pop %v1250
        %v1252 = vmul.f32 %v1234, 1.442695
        %v1253 = vpow.pop %v1252
        %v1254 = vmul.f32 %v1235, 1.442695
        %v1255 = vpow.pop %v1254
        %v1256 = vmul.f32 %v1236, 1.442695
        %v1257 = vpow.pop %v1256
        %v1258 = vmul.f32 %v1237, 1.442695
        %v1259 = vpow.pop %v1258
        %v1260 = vmul.f32 %v1238, 1.442695
        %v1261 = vpow.pop %v1260
        %v1262 = vmul.f32 %v1239, 1.442695
        %v1263 = vpow.pop %v1262
        %v1264 = vmul.f32 %v1240, 1.442695
        %v1265 = vpow.pop %v1264
        %v1266 = vmul.f32 %v1241, 1.442695
        %v1267 = vpow.pop %v1266
        %v1268 = vmul.f32 %v1242, 1.442695
        %v1269 = vpow.pop %v1268
        %v1270 = vmul.f32 %v1243, 1.442695
        %v1271 = vpow.pop %v1270
        %v1272 = vmul.f32 %v1244, 1.442695
        %v1273 = vpow.pop %v1272
        %v1274 = vmul.f32 %v1245, 1.442695
        %v1275 = vpow.pop %v1274
        %v1276 = vmul.f32 %v1246, 1.442695
        %v1277 = vpow.pop %v1276
        %v1278 = vmul.f32 %v1247, 1.442695
        %v1279 = vpow.pop %v1278
        %1280 = vadd.xlane.f32.xlu0 %v1249
        %v1281 = vpop.xlane.xlu0 %1280
        %1282 = vadd.xlane.f32.xlu0 %v1251
        %v1283 = vpop.xlane.xlu0 %1282
        %1284 = vadd.xlane.f32.xlu0 %v1253
        %v1285 = vpop.xlane.xlu0 %1284
        %1286 = vadd.xlane.f32.xlu0 %v1255
        %v1287 = vpop.xlane.xlu0 %1286
        %1288 = vadd.xlane.f32.xlu0 %v1257
        %v1289 = vpop.xlane.xlu0 %1288
        %1290 = vadd.xlane.f32.xlu0 %v1259
        %v1291 = vpop.xlane.xlu0 %1290
        %1292 = vadd.xlane.f32.xlu0 %v1261
        %v1293 = vpop.xlane.xlu0 %1292
        %1294 = vadd.xlane.f32.xlu0 %v1263
        %v1295 = vpop.xlane.xlu0 %1294
        %1296 = vadd.xlane.f32.xlu0 %v1265
        %v1297 = vpop.xlane.xlu0 %1296
        %1298 = vadd.xlane.f32.xlu0 %v1267
        %v1299 = vpop.xlane.xlu0 %1298
        %1300 = vadd.xlane.f32.xlu0 %v1269
        %v1301 = vpop.xlane.xlu0 %1300
        %1302 = vadd.xlane.f32.xlu0 %v1271
        %v1303 = vpop.xlane.xlu0 %1302
        %1304 = vadd.xlane.f32.xlu0 %v1273
        %v1305 = vpop.xlane.xlu0 %1304
        %1306 = vadd.xlane.f32.xlu0 %v1275
        %v1307 = vpop.xlane.xlu0 %1306
        %1308 = vadd.xlane.f32.xlu0 %v1277
        %v1309 = vpop.xlane.xlu0 %1308
        %1310 = vadd.xlane.f32.xlu0 %v1279
        %v1311 = vpop.xlane.xlu0 %1310
        %v1312 = vpack.c.bf16 %v1251, %v1249
        %v1313 = vpack.c.bf16 %v1255, %v1253
        %v1314 = vpack.c.bf16 %v1259, %v1257
        %v1315 = vpack.c.bf16 %v1263, %v1261
        %v1316 = vpack.c.bf16 %v1267, %v1265
        %v1317 = vpack.c.bf16 %v1271, %v1269
        %v1318 = vpack.c.bf16 %v1275, %v1273
        %v1319 = vpack.c.bf16 %v1279, %v1277
        %1320 = vrot.lane.b32.xlu0 %v524, 48
        %v1321 = vpop.permute.xlu0 %1320
        %1322 = vrot.lane.b32.xlu0 %v525, 48
        %v1323 = vpop.permute.xlu0 %1322
        %1324 = vrot.lane.b32.xlu0 %v526, 48
        %v1325 = vpop.permute.xlu0 %1324
        %1326 = vrot.lane.b32.xlu0 %v527, 48
        %v1327 = vpop.permute.xlu0 %1326
        %1328 = vrot.lane.b32.xlu0 %v528, 48
        %v1329 = vpop.permute.xlu0 %1328
        %1330 = vrot.lane.b32.xlu0 %v529, 48
        %v1331 = vpop.permute.xlu0 %1330
        %1332 = vrot.lane.b32.xlu0 %v530, 48
        %v1333 = vpop.permute.xlu0 %1332
        %1334 = vrot.lane.b32.xlu0 %v531, 48
        %v1335 = vpop.permute.xlu0 %1334
        %1344 = vmatprep.subr.bf16.mxu0 0
        %1345 = vmatpush1.bf16.msra.mxu0 %v1321
        %1346 = vmatprep.subr.bf16.mxu0 0
        %1347 = vmatpush1.bf16.msra.mxu0 %v1323
        %1348 = vmatprep.subr.bf16.mxu0 0
        %1349 = vmatpush1.bf16.msra.mxu0 %v1325
        %1350 = vmatprep.subr.bf16.mxu0 0
        %1351 = vmatpush1.bf16.msra.mxu0 %v1327
        %1352 = vmatprep.subr.bf16.mxu0 0
        %1353 = vmatpush1.bf16.msra.mxu0 %v1329
        %1354 = vmatprep.subr.bf16.mxu0 0
        %1355 = vmatpush1.bf16.msra.mxu0 %v1331
        %1356 = vmatprep.subr.bf16.mxu0 0
        %1357 = vmatpush1.bf16.msra.mxu0 %v1333
        %1358 = vmatprep.subr.bf16.mxu0 0
        %1359 = vmatpush1.bf16.msra.mxu0 %v1335
        %1360 = vmatprep.subr.bf16.mxu0 0
        %1361 = vmatpush1.bf16.msra.mxu0 0
        %1362 = vmatprep.subr.bf16.mxu0 0
        %1363 = vmatpush1.bf16.msra.mxu0 0
        %1364 = vmatprep.subr.bf16.mxu0 0
        %1365 = vmatpush1.bf16.msra.mxu0 0
        %1366 = vmatprep.subr.bf16.mxu0 0
        %1367 = vmatpush1.bf16.msra.mxu0 0
        %1368 = vmatprep.subr.bf16.mxu0 0
        %1369 = vmatpush1.bf16.msra.mxu0 0
        %1370 = vmatprep.subr.bf16.mxu0 0
        %1371 = vmatpush1.bf16.msra.mxu0 0
        %1372 = vmatprep.subr.bf16.mxu0 0
        %1373 = vmatpush1.bf16.msra.mxu0 0
        %1374 = vmatprep.subr.bf16.mxu0 0
        %1375 = vmatpush1.bf16.msra.mxu0 0
        %1376 = vmatprep.mubr.bf16.mxu0 0
        %1377 = vmatmul.mubr.bf16.gmra.mrb[0].mxu0 %v1312
        %v1378 = vpop.f32.mrb[0].mxu0
        %v1379 = vadd.f32 0.0, %v1378
        %v1380 = vpop.f32.mrb[0].mxu0
        %v1381 = vpop.f32.mrb[0].mxu0
        %v1382 = vadd.f32 0.0, %v1381
        %v1383 = vpop.f32.mrb[0].mxu0
        %1384 = vmatprep.mubr.bf16.mxu0 0
        %1385 = vmatmul.mubr.bf16.gmra.mrb[0].mxu0 %v1313
        %v1386 = vpop.f32.mrb[0].mxu0
        %v1387 = vadd.f32 0.0, %v1386
        %v1388 = vpop.f32.mrb[0].mxu0
        %v1389 = vpop.f32.mrb[0].mxu0
        %v1390 = vadd.f32 0.0, %v1389
        %v1391 = vpop.f32.mrb[0].mxu0
        %1392 = vmatprep.mubr.bf16.mxu0 0
        %1393 = vmatmul.mubr.bf16.gmra.mrb[0].mxu0 %v1314
        %v1394 = vpop.f32.mrb[0].mxu0
        %v1395 = vadd.f32 0.0, %v1394
        %v1396 = vpop.f32.mrb[0].mxu0
        %v1397 = vpop.f32.mrb[0].mxu0
        %v1398 = vadd.f32 0.0, %v1397
        %v1399 = vpop.f32.mrb[0].mxu0
        %1400 = vmatprep.mubr.bf16.mxu0 0
        %1401 = vmatmul.mubr.bf16.gmra.mrb[0].mxu0 %v1315
        %v1402 = vpop.f32.mrb[0].mxu0
        %v1403 = vadd.f32 0.0, %v1402
        %v1404 = vpop.f32.mrb[0].mxu0
        %v1405 = vpop.f32.mrb[0].mxu0
        %v1406 = vadd.f32 0.0, %v1405
        %v1407 = vpop.f32.mrb[0].mxu0
        %1408 = vmatprep.mubr.bf16.mxu0 0
        %1409 = vmatmul.mubr.bf16.gmra.mrb[0].mxu0 %v1316
        %v1410 = vpop.f32.mrb[0].mxu0
        %v1411 = vadd.f32 0.0, %v1410
        %v1412 = vpop.f32.mrb[0].mxu0
        %v1413 = vpop.f32.mrb[0].mxu0
        %v1414 = vadd.f32 0.0, %v1413
        %v1415 = vpop.f32.mrb[0].mxu0
        %1416 = vmatprep.mubr.bf16.mxu0 0
        %1417 = vmatmul.mubr.bf16.gmra.mrb[0].mxu0 %v1317
        %v1418 = vpop.f32.mrb[0].mxu0
        %v1419 = vadd.f32 0.0, %v1418
        %v1420 = vpop.f32.mrb[0].mxu0
        %v1421 = vpop.f32.mrb[0].mxu0
        %v1422 = vadd.f32 0.0, %v1421
        %v1423 = vpop.f32.mrb[0].mxu0
        %1424 = vmatprep.mubr.bf16.mxu0 0
        %1425 = vmatmul.mubr.bf16.gmra.mrb[0].mxu0 %v1318
        %v1426 = vpop.f32.mrb[0].mxu0
        %v1427 = vadd.f32 0.0, %v1426
        %v1428 = vpop.f32.mrb[0].mxu0
        %v1429 = vpop.f32.mrb[0].mxu0
        %v1430 = vadd.f32 0.0, %v1429
        %v1431 = vpop.f32.mrb[0].mxu0
        %1432 = vmatprep.mubr.bf16.mxu0 0
        %1433 = vmatmul.mubr.bf16.gmra.mrb[0].mxu0 %v1319
        %v1434 = vpop.f32.mrb[0].mxu0
        %v1435 = vadd.f32 0.0, %v1434
        %v1436 = vpop.f32.mrb[0].mxu0
        %v1437 = vpop.f32.mrb[0].mxu0
        %v1438 = vadd.f32 0.0, %v1437
        %v1439 = vpop.f32.mrb[0].mxu0
        %1440 = vdwg.mxu0
        %v1441 = vrcp.pop %v1281
        %v1442 = vrcp.pop %v1283
        %v1443 = vrcp.pop %v1285
        %v1444 = vrcp.pop %v1287
        %v1445 = vrcp.pop %v1289
        %v1446 = vrcp.pop %v1291
        %v1447 = vrcp.pop %v1293
        %v1448 = vrcp.pop %v1295
        %v1449 = vrcp.pop %v1297
        %v1450 = vrcp.pop %v1299
        %v1451 = vrcp.pop %v1301
        %v1452 = vrcp.pop %v1303
        %v1453 = vrcp.pop %v1305
        %v1454 = vrcp.pop %v1307
        %v1455 = vrcp.pop %v1309
        %v1456 = vrcp.pop %v1311
        %v1457 = vmul.f32 %v1379, %v1441
        %v1458 = vmul.f32 %v1382, %v1442
        %v1459 = vmul.f32 %v1387, %v1443
        %v1460 = vmul.f32 %v1390, %v1444
        %v1461 = vmul.f32 %v1395, %v1445
        %v1462 = vmul.f32 %v1398, %v1446
        %v1463 = vmul.f32 %v1403, %v1447
        %v1464 = vmul.f32 %v1406, %v1448
        %v1465 = vmul.f32 %v1411, %v1449
        %v1466 = vmul.f32 %v1414, %v1450
        %v1467 = vmul.f32 %v1419, %v1451
        %v1468 = vmul.f32 %v1422, %v1452
        %v1469 = vmul.f32 %v1427, %v1453
        %v1470 = vmul.f32 %v1430, %v1454
        %v1471 = vmul.f32 %v1435, %v1455
        %v1472 = vmul.f32 %v1438, %v1456
        %v1473 = vpack.c.bf16 %v1458, %v1457
        %v1474 = vpack.c.bf16 %v1460, %v1459
        %v1475 = vpack.c.bf16 %v1462, %v1461
        %v1476 = vpack.c.bf16 %v1464, %v1463
        %v1477 = vpack.c.bf16 %v1466, %v1465
        %v1478 = vpack.c.bf16 %v1468, %v1467
        %v1479 = vpack.c.bf16 %v1470, %v1469
        %v1480 = vpack.c.bf16 %v1472, %v1471
        %v1483 = vunpack.c.l.b16 %v571
        %v1484 = vunpack.c.l.b16 %v572
        %v1485 = vpack.c.b16 %v1484, %v1483
        %1486 = vrot.lane.b32.xlu0 %v1485, 112
        %v1487 = vpop.permute.xlu0 %1486
        %v1489 = vsel %vm402, %v1487, 0
        %v1492 = vsel %vm402, %v1473, 0
        %v1495 = vsel %vm402, %v1474, 0
        %v1498 = vsel %vm402, %v1475, 0
        %v1501 = vsel %vm402, %v1476, 0
        %v1504 = vsel %vm402, %v1477, 0
        %v1507 = vsel %vm402, %v1478, 0
        %v1510 = vsel %vm402, %v1479, 0
        %v1513 = vsel %vm402, %v1480, 0
        %1515 = vmatprep.subr.bf16.mxu0 0
        %1516 = vmatpush1.bf16.xpose.msra.mxu0 %v1492
        %1517 = vmatprep.subr.bf16.mxu0 0
        %1518 = vmatpush1.bf16.xpose.msra.mxu0 %v1495
        %1519 = vmatprep.subr.bf16.mxu0 0
        %1520 = vmatpush1.bf16.xpose.msra.mxu0 %v1498
        %1521 = vmatprep.subr.bf16.mxu0 0
        %1522 = vmatpush1.bf16.xpose.msra.mxu0 %v1501
        %1523 = vmatprep.subr.bf16.mxu0 0
        %1524 = vmatpush1.bf16.xpose.msra.mxu0 %v1504
        %1525 = vmatprep.subr.bf16.mxu0 0
        %1526 = vmatpush1.bf16.xpose.msra.mxu0 %v1507
        %1527 = vmatprep.subr.bf16.mxu0 0
        %1528 = vmatpush1.bf16.xpose.msra.mxu0 %v1510
        %1529 = vmatprep.subr.bf16.mxu0 0
        %1530 = vmatpush1.bf16.xpose.msra.mxu0 %v1513
        %1531 = vmatprep.subr.bf16.mxu0 0
        %1532 = vmatpush1.bf16.xpose.msra.mxu0 0
        %1533 = vmatprep.subr.bf16.mxu0 0
        %1534 = vmatpush1.bf16.xpose.msra.mxu0 0
        %1535 = vmatprep.subr.bf16.mxu0 0
        %1536 = vmatpush1.bf16.xpose.msra.mxu0 0
        %1537 = vmatprep.subr.bf16.mxu0 0
        %1538 = vmatpush1.bf16.xpose.msra.mxu0 0
        %1539 = vmatprep.subr.bf16.mxu0 0
        %1540 = vmatpush1.bf16.xpose.msra.mxu0 0
        %1541 = vmatprep.subr.bf16.mxu0 0
        %1542 = vmatpush1.bf16.xpose.msra.mxu0 0
        %1543 = vmatprep.subr.bf16.mxu0 0
        %1544 = vmatpush1.bf16.xpose.msra.mxu0 0
        %1545 = vmatprep.subr.bf16.mxu0 0
        %1546 = vmatpush1.bf16.xpose.msra.mxu0 0
        %1547 = vmatprep.mubr.bf16.mxu0 0
        %1548 = vmatmul.mubr.bf16.gmra.mrb[0].mxu0 %v1489
        %v1549 = vpop.f32.mrb[0].mxu0
        %v1550 = vadd.f32 0.0, %v1549
        %v1551 = vpop.f32.mrb[0].mxu0
        %v1552 = vpop.f32.mrb[0].mxu0
        %v1553 = vadd.f32 0.0, %v1552
        %v1554 = vpop.f32.mrb[0].mxu0
        %1555 = vdwg.mxu0
        %v1557 = vsel %vm402, %v1485, 0
        %v1560 = vsel %vm402, %v1015, 0
        %v1563 = vsel %vm402, %v1016, 0
        %v1566 = vsel %vm402, %v1017, 0
        %v1569 = vsel %vm402, %v1018, 0
        %v1572 = vsel %vm402, %v1019, 0
        %v1575 = vsel %vm402, %v1020, 0
        %v1578 = vsel %vm402, %v1021, 0
        %v1581 = vsel %vm402, %v1022, 0
        %1583 = vmatprep.subr.bf16.mxu0 0
        %1584 = vmatpush1.bf16.xpose.msra.mxu0 %v1560
        %1585 = vmatprep.subr.bf16.mxu0 0
        %1586 = vmatpush1.bf16.xpose.msra.mxu0 %v1563
        %1587 = vmatprep.subr.bf16.mxu0 0
        %1588 = vmatpush1.bf16.xpose.msra.mxu0 %v1566
        %1589 = vmatprep.subr.bf16.mxu0 0
        %1590 = vmatpush1.bf16.xpose.msra.mxu0 %v1569
        %1591 = vmatprep.subr.bf16.mxu0 0
        %1592 = vmatpush1.bf16.xpose.msra.mxu0 %v1572
        %1593 = vmatprep.subr.bf16.mxu0 0
        %1594 = vmatpush1.bf16.xpose.msra.mxu0 %v1575
        %1595 = vmatprep.subr.bf16.mxu0 0
        %1596 = vmatpush1.bf16.xpose.msra.mxu0 %v1578
        %1597 = vmatprep.subr.bf16.mxu0 0
        %1598 = vmatpush1.bf16.xpose.msra.mxu0 %v1581
        %1599 = vmatprep.subr.bf16.mxu0 0
        %1600 = vmatpush1.bf16.xpose.msra.mxu0 0
        %1601 = vmatprep.subr.bf16.mxu0 0
        %1602 = vmatpush1.bf16.xpose.msra.mxu0 0
        %1603 = vmatprep.subr.bf16.mxu0 0
        %1604 = vmatpush1.bf16.xpose.msra.mxu0 0
        %1605 = vmatprep.subr.bf16.mxu0 0
        %1606 = vmatpush1.bf16.xpose.msra.mxu0 0
        %1607 = vmatprep.subr.bf16.mxu0 0
        %1608 = vmatpush1.bf16.xpose.msra.mxu0 0
        %1609 = vmatprep.subr.bf16.mxu0 0
        %1610 = vmatpush1.bf16.xpose.msra.mxu0 0
        %1611 = vmatprep.subr.bf16.mxu0 0
        %1612 = vmatpush1.bf16.xpose.msra.mxu0 0
        %1613 = vmatprep.subr.bf16.mxu0 0
        %1614 = vmatpush1.bf16.xpose.msra.mxu0 0
        %1615 = vmatprep.mubr.bf16.mxu0 0
        %1616 = vmatmul.mubr.bf16.gmra.mrb[0].mxu0 %v1557
        %v1617 = vpop.f32.mrb[0].mxu0
        %v1618 = vadd.f32 %v1550, %v1617
        %v1619 = vpop.f32.mrb[0].mxu0
        %v1620 = vpop.f32.mrb[0].mxu0
        %v1621 = vadd.f32 %v1553, %v1620
        %v1622 = vpop.f32.mrb[0].mxu0
        %1623 = vdwg.mxu0
        %v1624 = vld [vmem:[%s329] sm:$0x1]
        %v1626 = vlaneseq
        %v1627 = vshrl.u32 %v1626, 7
        %v1628 = vsub.s32 0, %v1627
        %v1629 = vrot.slane %v1624, %v1628
        %v1631 = vmul.f32 %v1618, %v1629
        %v1632 = vmul.f32 %v1621, %v1629
        %v1633 = vld [vmem:[%s7] sm:$0xff]
        %v1634 = vld [vmem:[%s7 + $0x8] sm:$0xff]
        %1636 = vset.pattern.permute.xlu0 0
        %1637 = vperm.xlu0 %1636, %v1633
        %v1638 = vpop.permute.xlu0 %1637
        %1641 = vset.pattern.permute.xlu0 0
        %1642 = vperm.xlu0 %1641, %v1634
        %v1643 = vpop.permute.xlu0 %1642
        %v1645 = vadd.f32 %v1631, %v1638
        %v1646 = vadd.f32 %v1632, %v1643
        %1647 = vst [vmem:[%s317] sm:$0xff] %v1645
        %1648 = vst [vmem:[%s317 + $0x8] sm:$0xff] %v1646
        %s1649 = sand.u32 %s210, 1
        %s1650 = sand.u32 %s210, 1
        %s1651 = smul.addr %s1650, 16
        %s1652 = scalar_lea.vmem [#allocation2], %s1651
        // Predicated region
        $region53: #{gpts_forward.1} parent=51 // pred_check
          %p1653 = pneg %p220
        $region54: #{gpts_forward.1} parent=51 // pred_check_branch
          %1655 = sbr.rel (%p1653) target = $region56
        $region55: #{gpts_forward.1} parent=51 // pred_region
          %s1656 = smul.addr %s19, 8
          %s1657 = scalar_lea.vmem %s8, %s1656
          // Predicated region
          $region57: #{gpts_forward.1} parent=55 // pred_check
            _
          $region58: #{gpts_forward.1} parent=55 // pred_check_branch
            %1659 = sbr.rel (0) target = $region60
          $region59: #{gpts_forward.1} parent=55 // pred_region
            // Predicated region
            $region61: #{gpts_forward.1} parent=59 // pred_check
              _
            $region62: #{gpts_forward.1} parent=59 // pred_check_branch
              %1661 = sbr.rel (0) target = $region64
            $region63: #{gpts_forward.1} parent=59 // pred_region
              // Predicated region
              $region76: #{gpts_forward.1} parent=63 // pred_check
                _
              $region77: #{gpts_forward.1} parent=63 // pred_check_branch
                %1678 = sbr.rel (0) target = $region79
              $region78: #{gpts_forward.1} parent=63 // pred_region
                loop: start=0, step=1, limit=1
                $region80: #{gpts_forward.1} parent=78 // loop_pre_header
                  _
                $region81: #{gpts_forward.1} parent=78 // loop_header
                  %s1680 = sphi 0, %s1684
                  %p1681 = scmp.ge.s32.totalorder %s1680, 1
                  %s1685 = sphi %s1652, %s1652
                  %s1686 = sphi %s1657, %s1657
                $region82: #{gpts_forward.1} parent=78 // loop_header_branch
                  %1683 = sbr.rel (%p1681) target = $region86
                $region83: #{gpts_forward.1} parent=78 // loop_body
                  %v1687 = vld [vmem:[%s1685] sm:$0xff]
                  %1688 = vst [vmem:[%s1686] sm:$0xff] %v1687
                  %v1689 = vld [vmem:[%s1685 + $0x8] sm:$0xff]
                  %1690 = vst [vmem:[%s1686 + $0x10] sm:$0xff] %v1689
                $region84: #{gpts_forward.1} parent=78 // loop_footer
                  %s1684 = sadd.s32 1, %s1680
                $region85: #{gpts_forward.1} parent=78 // loop_footer_branch
                  %1679 = sbr.rel target = $region81
                $region86: #{gpts_forward.1} parent=78 // loop_exit
                  _
              $region79: #{gpts_forward.1} parent=63 // pred_fallthru
                _
              // Predicated region
              $region87: #{gpts_forward.1} parent=63 // pred_check
                _
              $region88: #{gpts_forward.1} parent=63 // pred_check_branch
                %1692 = sbr.rel target = $region90
              $region89: #{gpts_forward.1} parent=63 // pred_region
                _
              $region90: #{gpts_forward.1} parent=63 // pred_fallthru
                _
            $region64: #{gpts_forward.1} parent=59 // pred_fallthru
              _
            // Predicated region
            $region65: #{gpts_forward.1} parent=59 // pred_check
              _
            $region66: #{gpts_forward.1} parent=59 // pred_check_branch
              %1663 = sbr.rel target = $region68
            $region67: #{gpts_forward.1} parent=59 // pred_region
              loop: start=0, step=1, limit=1
              $region69: #{gpts_forward.1} parent=67 // loop_pre_header
                _
              $region70: #{gpts_forward.1} parent=67 // loop_header
                %s1666 = sphi 0, %s1670
                %p1667 = scmp.ge.s32.totalorder %s1666, 1
                %s1671 = sphi %s1652, %s1652
                %s1672 = sphi %s1657, %s1657
              $region71: #{gpts_forward.1} parent=67 // loop_header_branch
                %1669 = sbr.rel (%p1667) target = $region75
              $region72: #{gpts_forward.1} parent=67 // loop_body
                %v1673 = vld [vmem:[%s1671] sm:$0xff]
                %1674 = vst [vmem:[%s1672] sm:$0xff] %v1673
                %v1675 = vld [vmem:[%s1671 + $0x8] sm:$0xff]
                %1676 = vst [vmem:[%s1672 + $0x10] sm:$0xff] %v1675
              $region73: #{gpts_forward.1} parent=67 // loop_footer
                %s1670 = sadd.s32 1, %s1666
              $region74: #{gpts_forward.1} parent=67 // loop_footer_branch
                %1665 = sbr.rel target = $region70
              $region75: #{gpts_forward.1} parent=67 // loop_exit
                _
            $region68: #{gpts_forward.1} parent=59 // pred_fallthru
              _
          $region60: #{gpts_forward.1} parent=55 // pred_fallthru
            _
          %1693 = vnop
        $region56: #{gpts_forward.1} parent=51 // pred_fallthru
          _
      $region52: #{gpts_forward.1} parent=5 // pred_fallthru
        _
      %p1694 = scmp.le.s32.totalorder 2, %s14
      // Predicated region
      $region91: #{gpts_forward.1} parent=5 // pred_check
        %p1695 = pneg %p1694
      $region92: #{gpts_forward.1} parent=5 // pred_check_branch
        %1697 = sbr.rel (%p1695) target = $region94
      $region93: #{gpts_forward.1} parent=5 // pred_region
        %s1698 = ssub.s32 %s14, 2
        // Predicated region
        $region95: #{gpts_forward.1} parent=93 // pred_check
          %p1699 = pneg %p226
        $region96: #{gpts_forward.1} parent=93 // pred_check_branch
          %1701 = sbr.rel (%p1699) target = $region98
        $region97: #{gpts_forward.1} parent=93 // pred_region
          %s1702 = sand.u32 %s211, 1
          %s1703 = sand.u32 %s211, 1
          %s1704 = smul.addr %s1703, 16
          %s1705 = scalar_lea.vmem [#allocation2], %s1704
        $region98: #{gpts_forward.1} parent=93 // pred_fallthru
          _
      $region94: #{gpts_forward.1} parent=5 // pred_fallthru
        _
    $region6: #{gpts_forward.1} parent=1 // loop_footer
      %s18 = sadd.s32 1, %s14
    $region7: #{gpts_forward.1} parent=1 // loop_footer_branch
      %13 = sbr.rel target = $region3
    $region8: #{gpts_forward.1} parent=1 // loop_exit
      _

</llo_original>
